<compile_context>
chip_gen: v7x
topology: tpu7x:2x2x1
jax: 0.10.0
libtpu: 0.0.40
codegen_flags: <defaults>
</compile_context>

<pallas_src>
import functools

import numpy as np
import jax
import jax.numpy as jnp
from jax import lax
from jax.experimental import pallas as pl
from jax.experimental.pallas import tpu as pltpu


# ---------------------------------------------------------------------------
# In-kernel helpers
# ---------------------------------------------------------------------------
def _bn_relu(x, g, b):
    """BatchNorm (training-mode batch stats, eps=1e-5) followed by ReLU."""
    mean = jnp.mean(x, axis=0, keepdims=True)
    var = jnp.mean((x - mean) ** 2, axis=0, keepdims=True)
    return jnp.maximum((x - mean) * lax.rsqrt(var + 1e-5) * g + b, 0.0)


def _gelu_tanh(x):
    # tanh-approximate GELU: runs on the EUP slot instead of a VALU erf poly.
    c = 0.7978845608028654  # sqrt(2/pi)
    return 0.5 * x * (1.0 + jnp.tanh(c * (x + 0.044715 * x * x * x)))


# ---------------------------------------------------------------------------
# Fused forward kernel (entire embed() stack + rank() head in one invocation)
# ---------------------------------------------------------------------------
def _fused_forward_kernel(a_ref, x_ref, w_ref, v_ref, sel_ref, o_ref, *,
                          num_gat, f_in, hidden, f_out, r_units, p_num):
    f32 = jnp.float32
    a = a_ref[...]                 # (N, N) sym-normalized adjacency (self-loops)
    mask = a > 0.0                 # edge mask derived in-kernel (no extra input)
    x = x_ref[...]                 # (N, F_in)

    # ----- unpack packed weight slab (static slices: no runtime cost) -----
    r = 0
    g0w = w_ref[r:r + f_in, :]; r += f_in                      # (F_in, H)
    gat_w = []
    for _ in range(num_gat):
        gat_w.append(w_ref[r:r + hidden, :]); r += hidden      # (H, H)
    g1w = w_ref[r:r + hidden, :f_out]; r += hidden             # (H, F_out)
    w1a = w_ref[r:r + f_out, :r_units]; r += f_out             # (F_out, R)
    w1b = w_ref[r:r + f_out, :r_units]; r += f_out             # (F_out, R)
    w2 = w_ref[r:r + r_units, :1]; r += r_units                # (R, 1)

    # ----- unpack packed vector slab -----
    v = 0
    bn0_g = v_ref[v:v + 1, :]; v += 1
    bn0_b = v_ref[v:v + 1, :]; v += 1
    gat_v = []
    for _ in range(num_gat):
        gat_v.append((v_ref[v:v + 1, :],          # a_src  (1, H)
                      v_ref[v + 1:v + 2, :],      # a_dst  (1, H)
                      v_ref[v + 2:v + 3, :],      # bn_g   (1, H)
                      v_ref[v + 3:v + 4, :]))     # bn_b   (1, H)
        v += 4
    g1b = v_ref[v:v + 1, :f_out]; v += 1
    b1 = v_ref[v:v + 1, :r_units]; v += 1
    ln_g = v_ref[v:v + 1, :r_units]; v += 1
    ln_b = v_ref[v:v + 1, :r_units]; v += 1
    b2 = v_ref[v:v + 1, :1]; v += 1

    sel_i = sel_ref[:p_num, :]     # (P, N) one-hot selection of first pair node
    sel_j = sel_ref[p_num:, :]     # (P, N) one-hot selection of second pair node

    # ----- GCN 0 (no residual): (A @ X) @ W, narrow F_in contracted first.
    # GCN/GAT biases feeding training-mode BatchNorm are omitted (mean cancels).
    h = jnp.dot(jnp.dot(a, x, preferred_element_type=f32), g0w,
                preferred_element_type=f32)
    h = _bn_relu(h, bn0_g, bn0_b)

    # ----- GAT stack (single head, PyG semantics, self-loops, neg_slope=0.2)
    for i in range(num_gat):
        a_src, a_dst, bng, bnb = gat_v[i]
        conv_ind = 2 + 2 * i
        residual = conv_ind not in (0, 2)   # only conv indices 0, 2 skip residual
        hw = jnp.dot(h, gat_w[i], preferred_element_type=f32)               # (N, H)
        # Both attention scores contract the minor dim of hw (NT matmuls),
        # independent of each other -> can be in flight together.
        s_dst = lax.dot_general(hw, a_dst, (((1,), (1,)), ((), ())),
                                preferred_element_type=f32)                 # (N, 1)
        s_src = lax.dot_general(a_src, hw, (((1,), (1,)), ((), ())),
                                preferred_element_type=f32)                 # (1, N)
        e = s_dst + s_src                     # e[dst, src]
        e = jnp.where(e > 0, e, 0.2 * e)      # LeakyReLU(0.2)
        e = jnp.where(mask, e, -1e30)         # mask non-edges
        e = e - jnp.max(e, axis=-1, keepdims=True)
        p = jnp.exp(e)
        p = p * pl.reciprocal(jnp.sum(p, axis=-1, keepdims=True), approx=True)
        out = jnp.dot(p, hw, preferred_element_type=f32)
        if residual:
            out = out + jnp.dot(a, h, preferred_element_type=f32)
        h = _bn_relu(out, bng, bnb)

    # ----- final GCN (with residual): A @ (H W) + b + A @ H == A @ (H W + H) + b
    emb = jnp.dot(a, jnp.dot(h, g1w, preferred_element_type=f32) + h,
                  preferred_element_type=f32) + g1b

    # ----- rank(): project THEN gather (F x R contraction at node granularity).
    pa = jnp.dot(emb, w1a, preferred_element_type=f32)                      # (N, R)
    pb = jnp.dot(emb, w1b, preferred_element_type=f32)                      # (N, R)
    hh = (jnp.dot(sel_i, pa, preferred_element_type=f32)
          + jnp.dot(sel_j, pb, preferred_element_type=f32) + b1)            # (P, R)
    # TODO(synk): pyg_nn.norm.LayerNorm default mode='graph' normalizes over all
    # nodes+channels of a graph; per-row LayerNorm (mode='node') implemented here.
    mu = jnp.mean(hh, axis=-1, keepdims=True)
    var = jnp.mean((hh - mu) ** 2, axis=-1, keepdims=True)
    hn = (hh - mu) * lax.rsqrt(var + 1e-5) * ln_g + ln_b
    hg = _gelu_tanh(hn)
    # Lane-dense output (1, P): logits_row = W2^T @ hg^T + b2
    o_ref[...] = lax.dot_general(w2, hg, (((0,), (1,)), ((), ())),
                                 preferred_element_type=f32) + b2


# ---------------------------------------------------------------------------
# Model glue (parameter init, packing, adjacency, pair generation, wrapper)
# ---------------------------------------------------------------------------
def init_params(key, input_features, output_features, hidden, num_gat, ranking_units):
    keys = iter(jax.random.split(key, 4 + 3 * num_gat + 4))
    p = {}
    p["gcn0_w"] = jax.random.normal(next(keys), (input_features, hidden), jnp.float32) * 0.2
    p["bn0_g"] = jnp.ones((1, hidden), jnp.float32)
    p["bn0_b"] = jnp.zeros((1, hidden), jnp.float32)
    # GCNConv / GATConv biases that feed directly into training-mode BatchNorm are
    # mathematically cancelled by the mean subtraction and are omitted entirely.
    for i in range(num_gat):
        p[f"gat{i}_w"] = jax.random.normal(next(keys), (hidden, hidden), jnp.float32) * 0.2
        p[f"gat{i}_asrc"] = jax.random.normal(next(keys), (1, hidden), jnp.float32) * 0.2
        p[f"gat{i}_adst"] = jax.random.normal(next(keys), (1, hidden), jnp.float32) * 0.2
        p[f"bn{i + 1}_g"] = jnp.ones((1, hidden), jnp.float32)
        p[f"bn{i + 1}_b"] = jnp.zeros((1, hidden), jnp.float32)
    p["gcn1_w"] = jax.random.normal(next(keys), (hidden, output_features), jnp.float32) * 0.2
    p["gcn1_b"] = jnp.zeros((1, output_features), jnp.float32)
    p["rank_w1"] = jax.random.normal(next(keys), (output_features * 2, ranking_units), jnp.float32) * 0.2
    p["rank_b1"] = jnp.zeros((1, ranking_units), jnp.float32)
    p["rank_ln_g"] = jnp.ones((1, ranking_units), jnp.float32)
    p["rank_ln_b"] = jnp.zeros((1, ranking_units), jnp.float32)
    p["rank_w2"] = jax.random.normal(next(keys), (ranking_units, 1), jnp.float32) * 0.2
    p["rank_b2"] = jnp.zeros((1, 1), jnp.float32)
    return p


def _pad_cols(m, width):
    m = jnp.asarray(m, jnp.float32)
    return jnp.pad(m, ((0, 0), (0, width - m.shape[1])))


def pack_param_slabs(params, num_gat, f_out, hidden):
    """Pack all parameters into two slabs so the kernel sees only 2 param DMAs."""
    # Weight slab: every matrix, rows concatenated, columns padded to `hidden`.
    w_rows = [params["gcn0_w"]]
    for i in range(num_gat):
        w_rows.append(params[f"gat{i}_w"])
    w_rows.append(params["gcn1_w"])
    w_rows.append(_pad_cols(params["rank_w1"][:f_out], hidden))   # W1a (node i half)
    w_rows.append(_pad_cols(params["rank_w1"][f_out:], hidden))   # W1b (node j half)
    w_rows.append(_pad_cols(params["rank_w2"], hidden))
    w_slab = jnp.concatenate(w_rows, axis=0)

    # Vector slab: every row vector, columns padded to `hidden`.
    v_rows = [params["bn0_g"], params["bn0_b"]]
    for i in range(num_gat):
        v_rows += [params[f"gat{i}_asrc"], params[f"gat{i}_adst"],
                   params[f"bn{i + 1}_g"], params[f"bn{i + 1}_b"]]
    v_rows.append(params["gcn1_b"])
    v_rows.append(_pad_cols(params["rank_b1"], hidden))
    v_rows.append(_pad_cols(params["rank_ln_g"], hidden))
    v_rows.append(_pad_cols(params["rank_ln_b"], hidden))
    v_rows.append(_pad_cols(params["rank_b2"], hidden))
    v_slab = jnp.concatenate(v_rows, axis=0)
    return w_slab, v_slab


def pair_indices(batch_np):
    """Ordered (i<j within each graph) node pairs, matching generate_concatenation."""
    idx_i, idx_j = [], []
    for g in range(int(batch_np.max()) + 1):
        nodes = np.where(batch_np == g)[0]
        for a in range(len(nodes) - 1):
            for b in range(a + 1, len(nodes)):
                idx_i.append(nodes[a])
                idx_j.append(nodes[b])
    return np.asarray(idx_i, np.int32), np.asarray(idx_j, np.int32)


def nice_model_forward(params, x, edge_index, batch_np, num_gat):
    """Forward pass with default task == Task.RANK, as one fused Pallas kernel."""
    n, f_in = x.shape
    hidden = params["gcn0_w"].shape[1]
    f_out = params["gcn1_w"].shape[1]
    r_units = params["rank_w1"].shape[1]
    assert f_out == hidden          # required by the residual in the final GCN layer
    assert r_units <= hidden        # TODO(synk): widen packed slabs if ranking_units > hidden

    # Adjacency with self-loops, symmetric normalization.
    # TODO(synk): GraphTool.get_normalizedAdjacencyMatrix_from_edgeIndex source not
    # given; standard symmetric normalization with self-loops is assumed.
    a = jnp.zeros((n, n), jnp.float32).at[edge_index[1], edge_index[0]].set(1.0)
    a_hat = jnp.minimum(a + jnp.eye(n, dtype=jnp.float32), 1.0)
    deg = jnp.sum(a_hat, axis=1)
    dinv = lax.rsqrt(deg)
    a_norm = a_hat * dinv[:, None] * dinv[None, :]

    # Static pair-selection matrices (one-hot rows), packed as one (2P, N) slab.
    idx_i, idx_j = pair_indices(batch_np)
    p_num = int(idx_i.shape[0])
    sel = np.zeros((2 * p_num, n), np.float32)
    sel[np.arange(p_num), idx_i] = 1.0
    sel[p_num + np.arange(p_num), idx_j] = 1.0

    w_slab, v_slab = pack_param_slabs(params, num_gat, f_out, hidden)

    kernel = functools.partial(_fused_forward_kernel, num_gat=num_gat, f_in=f_in,
                               hidden=hidden, f_out=f_out, r_units=r_units,
                               p_num=p_num)
    out = pl.pallas_call(
        kernel,
        out_shape=jax.ShapeDtypeStruct((1, p_num), jnp.float32),
        in_specs=[pl.BlockSpec(memory_space=pltpu.MemorySpace.VMEM)] * 5,
        out_specs=pl.BlockSpec(memory_space=pltpu.MemorySpace.VMEM),
    )(a_norm, x, w_slab, v_slab, jnp.asarray(sel))
    # TODO(synk): Task.VALUE path (valuing_layer MLP) not exercised by the default
    # forward (task=Task.RANK) and is not implemented here.
    return out.reshape(p_num, 1)        # lane-dense kernel output -> (P, 1)


# ---------------------------------------------------------------------------
if __name__ == "__main__":
    key = jax.random.PRNGKey(0)

    # Hyper-parameters (output_features must equal embedding_units[1] for the
    # residual in the final GCN layer, exactly as in the PyTorch forward).
    input_features = 8
    embedding_units = (2, 32)          # (num GAT layers, hidden width)
    output_features = embedding_units[1]
    ranking_units = 16
    num_gat, hidden = embedding_units

    # Small batched graph: 2 graphs of 6 nodes each, bidirectional ring topology.
    nodes_per_graph, num_graphs = 6, 2
    n = nodes_per_graph * num_graphs
    kx, kp = jax.random.split(key)
    x = jax.random.normal(kx, (n, input_features), jnp.float32)

    src, dst = [], []
    for g in range(num_graphs):
        off = g * nodes_per_graph
        for v in range(nodes_per_graph):
            u, w = off + v, off + (v + 1) % nodes_per_graph
            src += [u, w]
            dst += [w, u]
    edge_index = jnp.array([src, dst], dtype=jnp.int32)
    batch_np = np.repeat(np.arange(num_graphs), nodes_per_graph)

    params = init_params(kp, input_features, output_features, hidden, num_gat, ranking_units)

    logits = nice_model_forward(params, x, edge_index, batch_np, num_gat)
    logits = jax.block_until_ready(logits)

    expected_pairs = num_graphs * nodes_per_graph * (nodes_per_graph - 1) // 2
    assert logits.shape == (expected_pairs, 1), logits.shape
    assert bool(jnp.all(jnp.isfinite(logits)))
    print("KERNEL_OK")
</pallas_src>

<mosaic_0001>
module attributes {stable_mosaic.version = 11 : i64} {
  func.func @_fused_forward_kernel(%arg0: memref<12x12xf32, #tpu.memory_space<vmem>>, %arg1: memref<12x8xf32, #tpu.memory_space<vmem>>, %arg2: memref<184x32xf32, #tpu.memory_space<vmem>>, %arg3: memref<15x32xf32, #tpu.memory_space<vmem>>, %arg4: memref<60x12xf32, #tpu.memory_space<vmem>>, %arg5: memref<1x30xf32, #tpu.memory_space<vmem>>) attributes {dimension_semantics = [], scalar_prefetch = 0 : i64, scratch_operands = 0 : i64, tpu.core_type = #tpu.core_type<tc>} {
    %c0 = arith.constant 0 : index
    %c0_0 = arith.constant 0 : index
    %0 = vector.load %arg0[%c0, %c0_0] : memref<12x12xf32, #tpu.memory_space<vmem>>, vector<12x12xf32>
    %cst = arith.constant 0.000000e+00 : f32
    %1 = vector.broadcast %cst : f32 to vector<12x12xf32>
    %2 = arith.cmpf ogt, %0, %1 : vector<12x12xf32>
    %c0_1 = arith.constant 0 : index
    %c0_2 = arith.constant 0 : index
    %3 = vector.load %arg1[%c0_1, %c0_2] : memref<12x8xf32, #tpu.memory_space<vmem>>, vector<12x8xf32>
    %c0_3 = arith.constant 0 : index
    %c0_4 = arith.constant 0 : index
    %4 = vector.load %arg2[%c0_3, %c0_4] : memref<184x32xf32, #tpu.memory_space<vmem>>, vector<8x32xf32>
    %c8 = arith.constant 8 : index
    %c0_5 = arith.constant 0 : index
    %5 = vector.load %arg2[%c8, %c0_5] : memref<184x32xf32, #tpu.memory_space<vmem>>, vector<32x32xf32>
    %c40 = arith.constant 40 : index
    %c0_6 = arith.constant 0 : index
    %6 = vector.load %arg2[%c40, %c0_6] : memref<184x32xf32, #tpu.memory_space<vmem>>, vector<32x32xf32>
    %c72 = arith.constant 72 : index
    %c0_7 = arith.constant 0 : index
    %7 = vector.load %arg2[%c72, %c0_7] : memref<184x32xf32, #tpu.memory_space<vmem>>, vector<32x32xf32>
    %c104 = arith.constant 104 : index
    %c0_8 = arith.constant 0 : index
    %8 = vector.load %arg2[%c104, %c0_8] : memref<184x32xf32, #tpu.memory_space<vmem>>, vector<32x16xf32>
    %c136 = arith.constant 136 : index
    %c0_9 = arith.constant 0 : index
    %9 = vector.load %arg2[%c136, %c0_9] : memref<184x32xf32, #tpu.memory_space<vmem>>, vector<32x16xf32>
    %c168 = arith.constant 168 : index
    %c0_10 = arith.constant 0 : index
    %10 = vector.load %arg2[%c168, %c0_10] : memref<184x32xf32, #tpu.memory_space<vmem>>, vector<16x1xf32>
    %c0_11 = arith.constant 0 : index
    %c0_12 = arith.constant 0 : index
    %11 = vector.load %arg3[%c0_11, %c0_12] : memref<15x32xf32, #tpu.memory_space<vmem>>, vector<1x32xf32>
    %c1 = arith.constant 1 : index
    %c0_13 = arith.constant 0 : index
    %12 = vector.load %arg3[%c1, %c0_13] : memref<15x32xf32, #tpu.memory_space<vmem>>, vector<1x32xf32>
    %c2 = arith.constant 2 : index
    %c0_14 = arith.constant 0 : index
    %13 = vector.load %arg3[%c2, %c0_14] : memref<15x32xf32, #tpu.memory_space<vmem>>, vector<1x32xf32>
    %c3 = arith.constant 3 : index
    %c0_15 = arith.constant 0 : index
    %14 = vector.load %arg3[%c3, %c0_15] : memref<15x32xf32, #tpu.memory_space<vmem>>, vector<1x32xf32>
    %c4 = arith.constant 4 : index
    %c0_16 = arith.constant 0 : index
    %15 = vector.load %arg3[%c4, %c0_16] : memref<15x32xf32, #tpu.memory_space<vmem>>, vector<1x32xf32>
    %c5 = arith.constant 5 : index
    %c0_17 = arith.constant 0 : index
    %16 = vector.load %arg3[%c5, %c0_17] : memref<15x32xf32, #tpu.memory_space<vmem>>, vector<1x32xf32>
    %c6 = arith.constant 6 : index
    %c0_18 = arith.constant 0 : index
    %17 = vector.load %arg3[%c6, %c0_18] : memref<15x32xf32, #tpu.memory_space<vmem>>, vector<1x32xf32>
    %c7 = arith.constant 7 : index
    %c0_19 = arith.constant 0 : index
    %18 = vector.load %arg3[%c7, %c0_19] : memref<15x32xf32, #tpu.memory_space<vmem>>, vector<1x32xf32>
    %c8_20 = arith.constant 8 : index
    %c0_21 = arith.constant 0 : index
    %19 = vector.load %arg3[%c8_20, %c0_21] : memref<15x32xf32, #tpu.memory_space<vmem>>, vector<1x32xf32>
    %c9 = arith.constant 9 : index
    %c0_22 = arith.constant 0 : index
    %20 = vector.load %arg3[%c9, %c0_22] : memref<15x32xf32, #tpu.memory_space<vmem>>, vector<1x32xf32>
    %c10 = arith.constant 10 : index
    %c0_23 = arith.constant 0 : index
    %21 = vector.load %arg3[%c10, %c0_23] : memref<15x32xf32, #tpu.memory_space<vmem>>, vector<1x32xf32>
    %c11 = arith.constant 11 : index
    %c0_24 = arith.constant 0 : index
    %22 = vector.load %arg3[%c11, %c0_24] : memref<15x32xf32, #tpu.memory_space<vmem>>, vector<1x16xf32>
    %c12 = arith.constant 12 : index
    %c0_25 = arith.constant 0 : index
    %23 = vector.load %arg3[%c12, %c0_25] : memref<15x32xf32, #tpu.memory_space<vmem>>, vector<1x16xf32>
    %c13 = arith.constant 13 : index
    %c0_26 = arith.constant 0 : index
    %24 = vector.load %arg3[%c13, %c0_26] : memref<15x32xf32, #tpu.memory_space<vmem>>, vector<1x16xf32>
    %c14 = arith.constant 14 : index
    %c0_27 = arith.constant 0 : index
    %25 = vector.load %arg3[%c14, %c0_27] : memref<15x32xf32, #tpu.memory_space<vmem>>, vector<1x1xf32>
    %c0_28 = arith.constant 0 : index
    %c0_29 = arith.constant 0 : index
    %26 = vector.load %arg4[%c0_28, %c0_29] : memref<60x12xf32, #tpu.memory_space<vmem>>, vector<30x12xf32>
    %c30 = arith.constant 30 : index
    %c0_30 = arith.constant 0 : index
    %27 = vector.load %arg4[%c30, %c0_30] : memref<60x12xf32, #tpu.memory_space<vmem>>, vector<30x12xf32>
    %cst_31 = arith.constant dense<0.000000e+00> : vector<12x8xf32>
    %28 = tpu.matmul %0, %3, %cst_31 {dimension_numbers = #tpu.dot_dimension_numbers<[1], [0], [0], [1], [0, 0, 1, 1], [], []>} : vector<12x12xf32>, vector<12x8xf32>, vector<12x8xf32> -> vector<12x8xf32>
    %cst_32 = arith.constant dense<0.000000e+00> : vector<12x32xf32>
    %29 = tpu.matmul %28, %4, %cst_32 {dimension_numbers = #tpu.dot_dimension_numbers<[1], [0], [0], [1], [0, 0, 1, 1], [], []>} : vector<12x8xf32>, vector<8x32xf32>, vector<12x32xf32> -> vector<12x32xf32>
    %cst_33 = arith.constant dense<0.000000e+00> : vector<32xf32>
    %30 = vector.multi_reduction <add>, %29, %cst_33 [0] : vector<12x32xf32> to vector<32xf32>
    %31 = vector.shape_cast %30 : vector<32xf32> to vector<1x32xf32>
    %cst_34 = arith.constant 1.200000e+01 : f32
    %32 = vector.broadcast %cst_34 : f32 to vector<1x32xf32>
    %33 = arith.divf %31, %32 : vector<1x32xf32>
    %34 = vector.broadcast %33 : vector<1x32xf32> to vector<12x32xf32>
    %35 = arith.subf %29, %34 : vector<12x32xf32>
    %36 = arith.mulf %35, %35 : vector<12x32xf32>
    %cst_35 = arith.constant dense<0.000000e+00> : vector<32xf32>
    %37 = vector.multi_reduction <add>, %36, %cst_35 [0] : vector<12x32xf32> to vector<32xf32>
    %38 = vector.shape_cast %37 : vector<32xf32> to vector<1x32xf32>
    %cst_36 = arith.constant 1.200000e+01 : f32
    %39 = vector.broadcast %cst_36 : f32 to vector<1x32xf32>
    %40 = arith.divf %38, %39 : vector<1x32xf32>
    %41 = vector.broadcast %33 : vector<1x32xf32> to vector<12x32xf32>
    %42 = arith.subf %29, %41 : vector<12x32xf32>
    %cst_37 = arith.constant 9.99999974E-6 : f32
    %43 = vector.broadcast %cst_37 : f32 to vector<1x32xf32>
    %44 = arith.addf %40, %43 : vector<1x32xf32>
    %45 = math.rsqrt %44 : vector<1x32xf32>
    %46 = vector.broadcast %45 : vector<1x32xf32> to vector<12x32xf32>
    %47 = arith.mulf %42, %46 : vector<12x32xf32>
    %48 = vector.broadcast %11 : vector<1x32xf32> to vector<12x32xf32>
    %49 = arith.mulf %47, %48 : vector<12x32xf32>
    %50 = vector.broadcast %12 : vector<1x32xf32> to vector<12x32xf32>
    %51 = arith.addf %49, %50 : vector<12x32xf32>
    %cst_38 = arith.constant 0.000000e+00 : f32
    %52 = vector.broadcast %cst_38 : f32 to vector<12x32xf32>
    %53 = arith.maximumf %51, %52 : vector<12x32xf32>
    %cst_39 = arith.constant dense<0.000000e+00> : vector<12x32xf32>
    %54 = tpu.matmul %53, %5, %cst_39 {dimension_numbers = #tpu.dot_dimension_numbers<[1], [0], [0], [1], [0, 0, 1, 1], [], []>} : vector<12x32xf32>, vector<32x32xf32>, vector<12x32xf32> -> vector<12x32xf32>
    %cst_40 = arith.constant dense<0.000000e+00> : vector<12x1xf32>
    %55 = tpu.matmul %54, %14, %cst_40 {dimension_numbers = #tpu.dot_dimension_numbers<[1], [1], [0], [0], [0, 0, 1, 0], [], []>} : vector<12x32xf32>, vector<1x32xf32>, vector<12x1xf32> -> vector<12x1xf32>
    %cst_41 = arith.constant dense<0.000000e+00> : vector<1x12xf32>
    %56 = tpu.matmul %13, %54, %cst_41 {dimension_numbers = #tpu.dot_dimension_numbers<[1], [1], [0], [0], [0, 0, 1, 0], [], []>} : vector<1x32xf32>, vector<12x32xf32>, vector<1x12xf32> -> vector<1x12xf32>
    %57 = vector.broadcast %55 : vector<12x1xf32> to vector<12x12xf32>
    %58 = vector.broadcast %56 : vector<1x12xf32> to vector<12x12xf32>
    %59 = arith.addf %57, %58 : vector<12x12xf32>
    %cst_42 = arith.constant 0.000000e+00 : f32
    %60 = vector.broadcast %cst_42 : f32 to vector<12x12xf32>
    %61 = arith.cmpf ogt, %59, %60 : vector<12x12xf32>
    %cst_43 = arith.constant 2.000000e-01 : f32
    %62 = vector.broadcast %cst_43 : f32 to vector<12x12xf32>
    %63 = arith.mulf %62, %59 : vector<12x12xf32>
    %64 = arith.select %61, %59, %63 : vector<12x12xi1>, vector<12x12xf32>
    %cst_44 = arith.constant -1.000000e+30 : f32
    %65 = vector.broadcast %cst_44 : f32 to vector<12x12xf32>
    %66 = arith.select %2, %64, %65 : vector<12x12xi1>, vector<12x12xf32>
    %cst_45 = arith.constant dense<0xFF800000> : vector<12xf32>
    %67 = vector.multi_reduction <maximumf>, %66, %cst_45 [1] : vector<12x12xf32> to vector<12xf32>
    %68 = vector.shape_cast %67 : vector<12xf32> to vector<12x1xf32>
    %69 = vector.broadcast %68 : vector<12x1xf32> to vector<12x12xf32>
    %70 = arith.subf %66, %69 : vector<12x12xf32>
    %71 = math.exp %70 : vector<12x12xf32>
    %cst_46 = arith.constant dense<0.000000e+00> : vector<12xf32>
    %72 = vector.multi_reduction <add>, %71, %cst_46 [1] : vector<12x12xf32> to vector<12xf32>
    %73 = vector.shape_cast %72 : vector<12xf32> to vector<12x1xf32>
    %74 = tpu.reciprocal %73 {approx = true} : vector<12x1xf32> -> vector<12x1xf32>
    %75 = vector.broadcast %74 : vector<12x1xf32> to vector<12x12xf32>
    %76 = arith.mulf %71, %75 : vector<12x12xf32>
    %cst_47 = arith.constant dense<0.000000e+00> : vector<12x32xf32>
    %77 = tpu.matmul %76, %54, %cst_47 {dimension_numbers = #tpu.dot_dimension_numbers<[1], [0], [0], [1], [0, 0, 1, 1], [], []>} : vector<12x12xf32>, vector<12x32xf32>, vector<12x32xf32> -> vector<12x32xf32>
    %cst_48 = arith.constant dense<0.000000e+00> : vector<32xf32>
    %78 = vector.multi_reduction <add>, %77, %cst_48 [0] : vector<12x32xf32> to vector<32xf32>
    %79 = vector.shape_cast %78 : vector<32xf32> to vector<1x32xf32>
    %cst_49 = arith.constant 1.200000e+01 : f32
    %80 = vector.broadcast %cst_49 : f32 to vector<1x32xf32>
    %81 = arith.divf %79, %80 : vector<1x32xf32>
    %82 = vector.broadcast %81 : vector<1x32xf32> to vector<12x32xf32>
    %83 = arith.subf %77, %82 : vector<12x32xf32>
    %84 = arith.mulf %83, %83 : vector<12x32xf32>
    %cst_50 = arith.constant dense<0.000000e+00> : vector<32xf32>
    %85 = vector.multi_reduction <add>, %84, %cst_50 [0] : vector<12x32xf32> to vector<32xf32>
    %86 = vector.shape_cast %85 : vector<32xf32> to vector<1x32xf32>
    %cst_51 = arith.constant 1.200000e+01 : f32
    %87 = vector.broadcast %cst_51 : f32 to vector<1x32xf32>
    %88 = arith.divf %86, %87 : vector<1x32xf32>
    %89 = vector.broadcast %81 : vector<1x32xf32> to vector<12x32xf32>
    %90 = arith.subf %77, %89 : vector<12x32xf32>
    %cst_52 = arith.constant 9.99999974E-6 : f32
    %91 = vector.broadcast %cst_52 : f32 to vector<1x32xf32>
    %92 = arith.addf %88, %91 : vector<1x32xf32>
    %93 = math.rsqrt %92 : vector<1x32xf32>
    %94 = vector.broadcast %93 : vector<1x32xf32> to vector<12x32xf32>
    %95 = arith.mulf %90, %94 : vector<12x32xf32>
    %96 = vector.broadcast %15 : vector<1x32xf32> to vector<12x32xf32>
    %97 = arith.mulf %95, %96 : vector<12x32xf32>
    %98 = vector.broadcast %16 : vector<1x32xf32> to vector<12x32xf32>
    %99 = arith.addf %97, %98 : vector<12x32xf32>
    %cst_53 = arith.constant 0.000000e+00 : f32
    %100 = vector.broadcast %cst_53 : f32 to vector<12x32xf32>
    %101 = arith.maximumf %99, %100 : vector<12x32xf32>
    %cst_54 = arith.constant dense<0.000000e+00> : vector<12x32xf32>
    %102 = tpu.matmul %101, %6, %cst_54 {dimension_numbers = #tpu.dot_dimension_numbers<[1], [0], [0], [1], [0, 0, 1, 1], [], []>} : vector<12x32xf32>, vector<32x32xf32>, vector<12x32xf32> -> vector<12x32xf32>
    %cst_55 = arith.constant dense<0.000000e+00> : vector<12x1xf32>
    %103 = tpu.matmul %102, %18, %cst_55 {dimension_numbers = #tpu.dot_dimension_numbers<[1], [1], [0], [0], [0, 0, 1, 0], [], []>} : vector<12x32xf32>, vector<1x32xf32>, vector<12x1xf32> -> vector<12x1xf32>
    %cst_56 = arith.constant dense<0.000000e+00> : vector<1x12xf32>
    %104 = tpu.matmul %17, %102, %cst_56 {dimension_numbers = #tpu.dot_dimension_numbers<[1], [1], [0], [0], [0, 0, 1, 0], [], []>} : vector<1x32xf32>, vector<12x32xf32>, vector<1x12xf32> -> vector<1x12xf32>
    %105 = vector.broadcast %103 : vector<12x1xf32> to vector<12x12xf32>
    %106 = vector.broadcast %104 : vector<1x12xf32> to vector<12x12xf32>
    %107 = arith.addf %105, %106 : vector<12x12xf32>
    %cst_57 = arith.constant 0.000000e+00 : f32
    %108 = vector.broadcast %cst_57 : f32 to vector<12x12xf32>
    %109 = arith.cmpf ogt, %107, %108 : vector<12x12xf32>
    %cst_58 = arith.constant 2.000000e-01 : f32
    %110 = vector.broadcast %cst_58 : f32 to vector<12x12xf32>
    %111 = arith.mulf %110, %107 : vector<12x12xf32>
    %112 = arith.select %109, %107, %111 : vector<12x12xi1>, vector<12x12xf32>
    %cst_59 = arith.constant -1.000000e+30 : f32
    %113 = vector.broadcast %cst_59 : f32 to vector<12x12xf32>
    %114 = arith.select %2, %112, %113 : vector<12x12xi1>, vector<12x12xf32>
    %cst_60 = arith.constant dense<0xFF800000> : vector<12xf32>
    %115 = vector.multi_reduction <maximumf>, %114, %cst_60 [1] : vector<12x12xf32> to vector<12xf32>
    %116 = vector.shape_cast %115 : vector<12xf32> to vector<12x1xf32>
    %117 = vector.broadcast %116 : vector<12x1xf32> to vector<12x12xf32>
    %118 = arith.subf %114, %117 : vector<12x12xf32>
    %119 = math.exp %118 : vector<12x12xf32>
    %cst_61 = arith.constant dense<0.000000e+00> : vector<12xf32>
    %120 = vector.multi_reduction <add>, %119, %cst_61 [1] : vector<12x12xf32> to vector<12xf32>
    %121 = vector.shape_cast %120 : vector<12xf32> to vector<12x1xf32>
    %122 = tpu.reciprocal %121 {approx = true} : vector<12x1xf32> -> vector<12x1xf32>
    %123 = vector.broadcast %122 : vector<12x1xf32> to vector<12x12xf32>
    %124 = arith.mulf %119, %123 : vector<12x12xf32>
    %cst_62 = arith.constant dense<0.000000e+00> : vector<12x32xf32>
    %125 = tpu.matmul %124, %102, %cst_62 {dimension_numbers = #tpu.dot_dimension_numbers<[1], [0], [0], [1], [0, 0, 1, 1], [], []>} : vector<12x12xf32>, vector<12x32xf32>, vector<12x32xf32> -> vector<12x32xf32>
    %cst_63 = arith.constant dense<0.000000e+00> : vector<12x32xf32>
    %126 = tpu.matmul %0, %101, %cst_63 {dimension_numbers = #tpu.dot_dimension_numbers<[1], [0], [0], [1], [0, 0, 1, 1], [], []>} : vector<12x12xf32>, vector<12x32xf32>, vector<12x32xf32> -> vector<12x32xf32>
    %127 = arith.addf %125, %126 : vector<12x32xf32>
    %cst_64 = arith.constant dense<0.000000e+00> : vector<32xf32>
    %128 = vector.multi_reduction <add>, %127, %cst_64 [0] : vector<12x32xf32> to vector<32xf32>
    %129 = vector.shape_cast %128 : vector<32xf32> to vector<1x32xf32>
    %cst_65 = arith.constant 1.200000e+01 : f32
    %130 = vector.broadcast %cst_65 : f32 to vector<1x32xf32>
    %131 = arith.divf %129, %130 : vector<1x32xf32>
    %132 = vector.broadcast %131 : vector<1x32xf32> to vector<12x32xf32>
    %133 = arith.subf %127, %132 : vector<12x32xf32>
    %134 = arith.mulf %133, %133 : vector<12x32xf32>
    %cst_66 = arith.constant dense<0.000000e+00> : vector<32xf32>
    %135 = vector.multi_reduction <add>, %134, %cst_66 [0] : vector<12x32xf32> to vector<32xf32>
    %136 = vector.shape_cast %135 : vector<32xf32> to vector<1x32xf32>
    %cst_67 = arith.constant 1.200000e+01 : f32
    %137 = vector.broadcast %cst_67 : f32 to vector<1x32xf32>
    %138 = arith.divf %136, %137 : vector<1x32xf32>
    %139 = vector.broadcast %131 : vector<1x32xf32> to vector<12x32xf32>
    %140 = arith.subf %127, %139 : vector<12x32xf32>
    %cst_68 = arith.constant 9.99999974E-6 : f32
    %141 = vector.broadcast %cst_68 : f32 to vector<1x32xf32>
    %142 = arith.addf %138, %141 : vector<1x32xf32>
    %143 = math.rsqrt %142 : vector<1x32xf32>
    %144 = vector.broadcast %143 : vector<1x32xf32> to vector<12x32xf32>
    %145 = arith.mulf %140, %144 : vector<12x32xf32>
    %146 = vector.broadcast %19 : vector<1x32xf32> to vector<12x32xf32>
    %147 = arith.mulf %145, %146 : vector<12x32xf32>
    %148 = vector.broadcast %20 : vector<1x32xf32> to vector<12x32xf32>
    %149 = arith.addf %147, %148 : vector<12x32xf32>
    %cst_69 = arith.constant 0.000000e+00 : f32
    %150 = vector.broadcast %cst_69 : f32 to vector<12x32xf32>
    %151 = arith.maximumf %149, %150 : vector<12x32xf32>
    %cst_70 = arith.constant dense<0.000000e+00> : vector<12x32xf32>
    %152 = tpu.matmul %151, %7, %cst_70 {dimension_numbers = #tpu.dot_dimension_numbers<[1], [0], [0], [1], [0, 0, 1, 1], [], []>} : vector<12x32xf32>, vector<32x32xf32>, vector<12x32xf32> -> vector<12x32xf32>
    %153 = arith.addf %152, %151 : vector<12x32xf32>
    %cst_71 = arith.constant dense<0.000000e+00> : vector<12x32xf32>
    %154 = tpu.matmul %0, %153, %cst_71 {dimension_numbers = #tpu.dot_dimension_numbers<[1], [0], [0], [1], [0, 0, 1, 1], [], []>} : vector<12x12xf32>, vector<12x32xf32>, vector<12x32xf32> -> vector<12x32xf32>
    %155 = vector.broadcast %21 : vector<1x32xf32> to vector<12x32xf32>
    %156 = arith.addf %154, %155 : vector<12x32xf32>
    %cst_72 = arith.constant dense<0.000000e+00> : vector<12x16xf32>
    %157 = tpu.matmul %156, %8, %cst_72 {dimension_numbers = #tpu.dot_dimension_numbers<[1], [0], [0], [1], [0, 0, 1, 1], [], []>} : vector<12x32xf32>, vector<32x16xf32>, vector<12x16xf32> -> vector<12x16xf32>
    %cst_73 = arith.constant dense<0.000000e+00> : vector<12x16xf32>
    %158 = tpu.matmul %156, %9, %cst_73 {dimension_numbers = #tpu.dot_dimension_numbers<[1], [0], [0], [1], [0, 0, 1, 1], [], []>} : vector<12x32xf32>, vector<32x16xf32>, vector<12x16xf32> -> vector<12x16xf32>
    %cst_74 = arith.constant dense<0.000000e+00> : vector<30x16xf32>
    %159 = tpu.matmul %26, %157, %cst_74 {dimension_numbers = #tpu.dot_dimension_numbers<[1], [0], [0], [1], [0, 0, 1, 1], [], []>} : vector<30x12xf32>, vector<12x16xf32>, vector<30x16xf32> -> vector<30x16xf32>
    %cst_75 = arith.constant dense<0.000000e+00> : vector<30x16xf32>
    %160 = tpu.matmul %27, %158, %cst_75 {dimension_numbers = #tpu.dot_dimension_numbers<[1], [0], [0], [1], [0, 0, 1, 1], [], []>} : vector<30x12xf32>, vector<12x16xf32>, vector<30x16xf32> -> vector<30x16xf32>
    %161 = arith.addf %159, %160 : vector<30x16xf32>
    %162 = vector.broadcast %22 : vector<1x16xf32> to vector<30x16xf32>
    %163 = arith.addf %161, %162 : vector<30x16xf32>
    %cst_76 = arith.constant dense<0.000000e+00> : vector<30xf32>
    %164 = vector.multi_reduction <add>, %163, %cst_76 [1] : vector<30x16xf32> to vector<30xf32>
    %165 = vector.shape_cast %164 : vector<30xf32> to vector<30x1xf32>
    %cst_77 = arith.constant 1.600000e+01 : f32
    %166 = vector.broadcast %cst_77 : f32 to vector<30x1xf32>
    %167 = arith.divf %165, %166 : vector<30x1xf32>
    %168 = vector.broadcast %167 : vector<30x1xf32> to vector<30x16xf32>
    %169 = arith.subf %163, %168 : vector<30x16xf32>
    %170 = arith.mulf %169, %169 : vector<30x16xf32>
    %cst_78 = arith.constant dense<0.000000e+00> : vector<30xf32>
    %171 = vector.multi_reduction <add>, %170, %cst_78 [1] : vector<30x16xf32> to vector<30xf32>
    %172 = vector.shape_cast %171 : vector<30xf32> to vector<30x1xf32>
    %cst_79 = arith.constant 1.600000e+01 : f32
    %173 = vector.broadcast %cst_79 : f32 to vector<30x1xf32>
    %174 = arith.divf %172, %173 : vector<30x1xf32>
    %175 = vector.broadcast %167 : vector<30x1xf32> to vector<30x16xf32>
    %176 = arith.subf %163, %175 : vector<30x16xf32>
    %cst_80 = arith.constant 9.99999974E-6 : f32
    %177 = vector.broadcast %cst_80 : f32 to vector<30x1xf32>
    %178 = arith.addf %174, %177 : vector<30x1xf32>
    %179 = math.rsqrt %178 : vector<30x1xf32>
    %180 = vector.broadcast %179 : vector<30x1xf32> to vector<30x16xf32>
    %181 = arith.mulf %176, %180 : vector<30x16xf32>
    %182 = vector.broadcast %23 : vector<1x16xf32> to vector<30x16xf32>
    %183 = arith.mulf %181, %182 : vector<30x16xf32>
    %184 = vector.broadcast %24 : vector<1x16xf32> to vector<30x16xf32>
    %185 = arith.addf %183, %184 : vector<30x16xf32>
    %cst_81 = arith.constant 5.000000e-01 : f32
    %186 = vector.broadcast %cst_81 : f32 to vector<30x16xf32>
    %187 = arith.mulf %186, %185 : vector<30x16xf32>
    %cst_82 = arith.constant 4.471500e-02 : f32
    %188 = vector.broadcast %cst_82 : f32 to vector<30x16xf32>
    %189 = arith.mulf %188, %185 : vector<30x16xf32>
    %190 = arith.mulf %189, %185 : vector<30x16xf32>
    %191 = arith.mulf %190, %185 : vector<30x16xf32>
    %192 = arith.addf %185, %191 : vector<30x16xf32>
    %cst_83 = arith.constant 0.797884583 : f32
    %193 = vector.broadcast %cst_83 : f32 to vector<30x16xf32>
    %194 = arith.mulf %193, %192 : vector<30x16xf32>
    %195 = math.tanh %194 : vector<30x16xf32>
    %cst_84 = arith.constant 1.000000e+00 : f32
    %196 = vector.broadcast %cst_84 : f32 to vector<30x16xf32>
    %197 = arith.addf %196, %195 : vector<30x16xf32>
    %198 = arith.mulf %187, %197 : vector<30x16xf32>
    %cst_85 = arith.constant dense<0.000000e+00> : vector<1x30xf32>
    %199 = tpu.matmul %10, %198, %cst_85 {dimension_numbers = #tpu.dot_dimension_numbers<[0], [1], [1], [0], [0, 1, 1, 0], [], []>} : vector<16x1xf32>, vector<30x16xf32>, vector<1x30xf32> -> vector<1x30xf32>
    %200 = vector.broadcast %25 : vector<1x1xf32> to vector<1x30xf32>
    %201 = arith.addf %199, %200 : vector<1x30xf32>
    %c0_86 = arith.constant 0 : index
    %c0_87 = arith.constant 0 : index
    %202 = vector.load %arg5[%c0_86, %c0_87] : memref<1x30xf32, #tpu.memory_space<vmem>>, vector<1x30xf32>
    tpu.vector_store %arg5[%c0_86, %c0_87], %201 {strides = array<i32>} : memref<1x30xf32, #tpu.memory_space<vmem>>, vector<1x30xf32>,
    return
  }
}

</mosaic_0001>

<llo_original>
// kernel: tpu_custom_call.1
$region0: #{tpu_custom_call.1}
  #allocation0 [shape = 'u32[]', space=smem, size = 0x4, offset = 0x4, fixed_abs, tag = 'smem constant byte address 0x4 - core index']
  #allocation1 [shape = 'u32[144,128]{1,0:T(1,128)}', space=vmem, size = 0x12000, scoped, tag = 'internal scratch']
  %s0 = inlined_call_operand.vmem [shape: f32[12,12], index: 0, kind: input, shape index: {}]
  %s1 = inlined_call_operand.vmem [shape: f32[12,8], index: 1, kind: input, shape index: {}]
  %s2 = inlined_call_operand.vmem [shape: f32[184,32], index: 2, kind: input, shape index: {}]
  %s3 = inlined_call_operand.vmem [shape: f32[15,32], index: 3, kind: input, shape index: {}]
  %s4 = inlined_call_operand.vmem [shape: f32[60,12], index: 4, kind: input, shape index: {}]
  %s5 = inlined_call_operand.hbm [shape: f32[1,30], index: 5, kind: output, shape index: {}]
  %s6 = sld [smem:[#allocation0]]
  $region30: #{tpu_custom_call.1} parent=0
    _
  %s8 = ssub.s32 1, %s6
  %s9 = scalar_select 0, %s8, %s6
  $region1: #{tpu_custom_call.1} parent=0
    #allocation2 [shape = 'u8[512]{0}', space=vmem, size = 0x400, scoped, tag = 'output window, operand 0, single buffered']
    #allocation3 [shape = 's32[1]{0}', space=sflag, size = 0x4, scoped, tag = 'scoped memory for tpu_custom_call.1']
    %10 = vsyncpa [#allocation3], 0
    // Predicated region
    $region2: #{tpu_custom_call.1} parent=1 // pred_check
      _
    $region3: #{tpu_custom_call.1} parent=1 // pred_check_branch
      %12 = sbr.rel (0) target = $region5
    $region4: #{tpu_custom_call.1} parent=1 // pred_region
      _
    $region5: #{tpu_custom_call.1} parent=1 // pred_fallthru
      _
    // Predicated region
    $region6: #{tpu_custom_call.1} parent=1 // pred_check
      _
    $region7: #{tpu_custom_call.1} parent=1 // pred_check_branch
      %14 = sbr.rel (0) target = $region9
    $region8: #{tpu_custom_call.1} parent=1 // pred_region
      _
    $region9: #{tpu_custom_call.1} parent=1 // pred_fallthru
      _
    // Predicated region
    $region10: #{tpu_custom_call.1} parent=1 // pred_check
      _
    $region11: #{tpu_custom_call.1} parent=1 // pred_check_branch
      %16 = sbr.rel (0) target = $region13
    $region12: #{tpu_custom_call.1} parent=1 // pred_region
      _
    $region13: #{tpu_custom_call.1} parent=1 // pred_fallthru
      _
    // Predicated region
    $region14: #{tpu_custom_call.1} parent=1 // pred_check
      _
    $region15: #{tpu_custom_call.1} parent=1 // pred_check_branch
      %18 = sbr.rel (0) target = $region17
    $region16: #{tpu_custom_call.1} parent=1 // pred_region
      _
    $region17: #{tpu_custom_call.1} parent=1 // pred_fallthru
      _
    // Predicated region
    $region18: #{tpu_custom_call.1} parent=1 // pred_check
      _
    $region19: #{tpu_custom_call.1} parent=1 // pred_check_branch
      %20 = sbr.rel (0) target = $region21
    $region20: #{tpu_custom_call.1} parent=1 // pred_region
      _
    $region21: #{tpu_custom_call.1} parent=1 // pred_fallthru
      _
    %v21 = vld [vmem:[%s0] sm:$0xff]
    %v22 = vld [vmem:[%s0 + $0x8] sm:$0xf]
    %vm23 = vcmp.gt.f32.partialorder %v21, 0.0
    %vm24 = vcmp.gt.f32.partialorder %v22, 0.0
    %v25 = vld [vmem:[%s1] sm:$0xff]
    %v26 = vld [vmem:[%s1 + $0x8] sm:$0xf]
    %v27 = vld [vmem:[%s2] sm:$0xff]
    %v28 = vld [vmem:[%s2 + $0x8] sm:$0xff]
    %v29 = vld [vmem:[%s2 + $0x10] sm:$0xff]
    %v30 = vld [vmem:[%s2 + $0x18] sm:$0xff]
    %v31 = vld [vmem:[%s2 + $0x20] sm:$0xff]
    %v32 = vld [vmem:[%s2 + $0x28] sm:$0xff]
    %v33 = vld [vmem:[%s2 + $0x30] sm:$0xff]
    %v34 = vld [vmem:[%s2 + $0x38] sm:$0xff]
    %v35 = vld [vmem:[%s2 + $0x40] sm:$0xff]
    %v36 = vld [vmem:[%s2 + $0x48] sm:$0xff]
    %v37 = vld [vmem:[%s2 + $0x50] sm:$0xff]
    %v38 = vld [vmem:[%s2 + $0x58] sm:$0xff]
    %v39 = vld [vmem:[%s2 + $0x60] sm:$0xff]
    %v40 = vld [vmem:[%s2 + $0x68] sm:$0xff]
    %v41 = vld [vmem:[%s2 + $0x70] sm:$0xff]
    %v42 = vld [vmem:[%s2 + $0x78] sm:$0xff]
    %v43 = vld [vmem:[%s2 + $0x80] sm:$0xff]
    %v44 = vld [vmem:[%s2 + $0x88] sm:$0xff]
    %v45 = vld [vmem:[%s2 + $0x90] sm:$0xff]
    %v46 = vld [vmem:[%s2 + $0x98] sm:$0xff]
    %v47 = vld [vmem:[%s2 + $0xa0] sm:$0xff]
    %v48 = vld [vmem:[%s2 + $0xa8] sm:$0xff]
    %v49 = vld [vmem:[%s2 + $0xb0] sm:$0xff]
    %v50 = vld [vmem:[%s3] sm:$0x1]
    %v51 = vld [vmem:[%s3 + $0x1] sm:$0x1]
    %v52 = vld [vmem:[%s3 + $0x2] sm:$0x1]
    %v53 = vld [vmem:[%s3 + $0x3] sm:$0x1]
    %v54 = vld [vmem:[%s3 + $0x4] sm:$0x1]
    %v55 = vld [vmem:[%s3 + $0x5] sm:$0x1]
    %v56 = vld [vmem:[%s3 + $0x6] sm:$0x1]
    %v57 = vld [vmem:[%s3 + $0x7] sm:$0x1]
    %v58 = vld [vmem:[%s3 + $0x8] sm:$0x1]
    %v59 = vld [vmem:[%s3 + $0x9] sm:$0x1]
    %v60 = vld [vmem:[%s3 + $0xa] sm:$0x1]
    %v61 = vld [vmem:[%s3 + $0xb] sm:$0x1]
    %v62 = vld [vmem:[%s3 + $0xc] sm:$0x1]
    %v63 = vld [vmem:[%s3 + $0xd] sm:$0x1]
    %v64 = vld [vmem:[%s3 + $0xe] sm:$0x1]
    %v65 = vld [vmem:[%s4] sm:$0xff]
    %v66 = vld [vmem:[%s4 + $0x8] sm:$0xff]
    %v67 = vld [vmem:[%s4 + $0x10] sm:$0xff]
    %v68 = vld [vmem:[%s4 + $0x18] sm:$0x3f]
    %v69 = vld [vmem:[%s4 + $0x1e] sm:$0xff]
    %v70 = vld [vmem:[%s4 + $0x26] sm:$0xff]
    %v71 = vld [vmem:[%s4 + $0x2e] sm:$0xff]
    %v72 = vld [vmem:[%s4 + $0x36] sm:$0x3f]
    %vm73 = vcmask 97280
    %v75 = vsel %vm73, %v21, 0
    %v78 = vsel %vm73, %v22, 0
    %vm80 = vcmask 1043456
    %v82 = vsel %vm80, %v26, 0
    %84 = vmatprep.subr.mxu0 0.0
    %85 = vmatpush1.msra.mxu0 %v25
    %86 = vmatprep.subr.mxu0 0.0
    %87 = vmatpush1.msra.mxu0 %v82
    %88 = vmatprep.subr.mxu0 0.0
    %89 = vmatpush1.msra.mxu0 0.0
    %90 = vmatprep.subr.mxu0 0.0
    %91 = vmatpush1.msra.mxu0 0.0
    %92 = vmatprep.subr.mxu0 0.0
    %93 = vmatpush1.msra.mxu0 0.0
    %94 = vmatprep.subr.mxu0 0.0
    %95 = vmatpush1.msra.mxu0 0.0
    %96 = vmatprep.subr.mxu0 0.0
    %97 = vmatpush1.msra.mxu0 0.0
    %98 = vmatprep.subr.mxu0 0.0
    %99 = vmatpush1.msra.mxu0 0.0
    %100 = vmatprep.subr.mxu0 0.0
    %101 = vmatpush1.msra.mxu0 0.0
    %102 = vmatprep.subr.mxu0 0.0
    %103 = vmatpush1.msra.mxu0 0.0
    %104 = vmatprep.subr.mxu0 0.0
    %105 = vmatpush1.msra.mxu0 0.0
    %106 = vmatprep.subr.mxu0 0.0
    %107 = vmatpush1.msra.mxu0 0.0
    %108 = vmatprep.subr.mxu0 0.0
    %109 = vmatpush1.msra.mxu0 0.0
    %110 = vmatprep.subr.mxu0 0.0
    %111 = vmatpush1.msra.mxu0 0.0
    %112 = vmatprep.subr.mxu0 0.0
    %113 = vmatpush1.msra.mxu0 0.0
    %114 = vmatprep.subr.mxu0 0.0
    %115 = vmatpush1.msra.mxu0 0.0
    %116 = vmatprep.subr.mxu0 0.0
    %117 = vmatpush1.msra.mxu0 0.0
    %118 = vmatprep.subr.mxu0 0.0
    %119 = vmatpush1.msra.mxu0 0.0
    %120 = vmatprep.subr.mxu0 0.0
    %121 = vmatpush1.msra.mxu0 0.0
    %122 = vmatprep.subr.mxu0 0.0
    %123 = vmatpush1.msra.mxu0 0.0
    %124 = vmatprep.subr.mxu0 0.0
    %125 = vmatpush1.msra.mxu0 0.0
    %126 = vmatprep.subr.mxu0 0.0
    %127 = vmatpush1.msra.mxu0 0.0
    %128 = vmatprep.subr.mxu0 0.0
    %129 = vmatpush1.msra.mxu0 0.0
    %130 = vmatprep.subr.mxu0 0.0
    %131 = vmatpush1.msra.mxu0 0.0
    %132 = vmatprep.subr.mxu0 0.0
    %133 = vmatpush1.msra.mxu0 0.0
    %134 = vmatprep.subr.mxu0 0.0
    %135 = vmatpush1.msra.mxu0 0.0
    %136 = vmatprep.subr.mxu0 0.0
    %137 = vmatpush1.msra.mxu0 0.0
    %138 = vmatprep.subr.mxu0 0.0
    %139 = vmatpush1.msra.mxu0 0.0
    %140 = vmatprep.subr.mxu0 0.0
    %141 = vmatpush1.msra.mxu0 0.0
    %142 = vmatprep.subr.mxu0 0.0
    %143 = vmatpush1.msra.mxu0 0.0
    %144 = vmatprep.subr.mxu0 0.0
    %145 = vmatpush1.msra.mxu0 0.0
    %146 = vmatprep.subr.mxu0 0.0
    %147 = vmatpush1.msra.mxu0 0.0
    %148 = vmatprep.mubr.f32.mxu0 0.0
    %149 = vmatmul.mubr.f32.gmra.mrb[0].mxu0 %v75
    %v150 = vpop.f32.mrb[0].mxu0
    %v151 = vadd.f32 0.0, %v150
    %v152 = vpop.f32.mrb[0].mxu0
    %153 = vmatprep.mubr.f32.mxu0 0.0
    %154 = vmatmul.mubr.f32.gmra.mrb[0].mxu0 %v78
    %v155 = vpop.f32.mrb[0].mxu0
    %v156 = vadd.f32 0.0, %v155
    %v157 = vpop.f32.mrb[0].mxu0
    %158 = vdwg.mxu0
    %vm159 = vcmask 64512
    %v161 = vsel %vm159, %v151, 0
    %v164 = vsel %vm159, %v156, 0
    %166 = vmatprep.subr.mxu0 0.0
    %167 = vmatpush1.msra.mxu0 %v27
    %168 = vmatprep.subr.mxu0 0.0
    %169 = vmatpush1.msra.mxu0 0.0
    %170 = vmatprep.subr.mxu0 0.0
    %171 = vmatpush1.msra.mxu0 0.0
    %172 = vmatprep.subr.mxu0 0.0
    %173 = vmatpush1.msra.mxu0 0.0
    %174 = vmatprep.subr.mxu0 0.0
    %175 = vmatpush1.msra.mxu0 0.0
    %176 = vmatprep.subr.mxu0 0.0
    %177 = vmatpush1.msra.mxu0 0.0
    %178 = vmatprep.subr.mxu0 0.0
    %179 = vmatpush1.msra.mxu0 0.0
    %180 = vmatprep.subr.mxu0 0.0
    %181 = vmatpush1.msra.mxu0 0.0
    %182 = vmatprep.subr.mxu0 0.0
    %183 = vmatpush1.msra.mxu0 0.0
    %184 = vmatprep.subr.mxu0 0.0
    %185 = vmatpush1.msra.mxu0 0.0
    %186 = vmatprep.subr.mxu0 0.0
    %187 = vmatpush1.msra.mxu0 0.0
    %188 = vmatprep.subr.mxu0 0.0
    %189 = vmatpush1.msra.mxu0 0.0
    %190 = vmatprep.subr.mxu0 0.0
    %191 = vmatpush1.msra.mxu0 0.0
    %192 = vmatprep.subr.mxu0 0.0
    %193 = vmatpush1.msra.mxu0 0.0
    %194 = vmatprep.subr.mxu0 0.0
    %195 = vmatpush1.msra.mxu0 0.0
    %196 = vmatprep.subr.mxu0 0.0
    %197 = vmatpush1.msra.mxu0 0.0
    %198 = vmatprep.subr.mxu0 0.0
    %199 = vmatpush1.msra.mxu0 0.0
    %200 = vmatprep.subr.mxu0 0.0
    %201 = vmatpush1.msra.mxu0 0.0
    %202 = vmatprep.subr.mxu0 0.0
    %203 = vmatpush1.msra.mxu0 0.0
    %204 = vmatprep.subr.mxu0 0.0
    %205 = vmatpush1.msra.mxu0 0.0
    %206 = vmatprep.subr.mxu0 0.0
    %207 = vmatpush1.msra.mxu0 0.0
    %208 = vmatprep.subr.mxu0 0.0
    %209 = vmatpush1.msra.mxu0 0.0
    %210 = vmatprep.subr.mxu0 0.0
    %211 = vmatpush1.msra.mxu0 0.0
    %212 = vmatprep.subr.mxu0 0.0
    %213 = vmatpush1.msra.mxu0 0.0
    %214 = vmatprep.subr.mxu0 0.0
    %215 = vmatpush1.msra.mxu0 0.0
    %216 = vmatprep.subr.mxu0 0.0
    %217 = vmatpush1.msra.mxu0 0.0
    %218 = vmatprep.subr.mxu0 0.0
    %219 = vmatpush1.msra.mxu0 0.0
    %220 = vmatprep.subr.mxu0 0.0
    %221 = vmatpush1.msra.mxu0 0.0
    %222 = vmatprep.subr.mxu0 0.0
    %223 = vmatpush1.msra.mxu0 0.0
    %224 = vmatprep.subr.mxu0 0.0
    %225 = vmatpush1.msra.mxu0 0.0
    %226 = vmatprep.subr.mxu0 0.0
    %227 = vmatpush1.msra.mxu0 0.0
    %228 = vmatprep.subr.mxu0 0.0
    %229 = vmatpush1.msra.mxu0 0.0
    %230 = vmatprep.mubr.f32.mxu0 0.0
    %231 = vmatmul.mubr.f32.gmra.mrb[0].mxu0 %v161
    %v232 = vpop.f32.mrb[0].mxu0
    %v233 = vadd.f32 0.0, %v232
    %v234 = vpop.f32.mrb[0].mxu0
    %235 = vmatprep.mubr.f32.mxu0 0.0
    %236 = vmatmul.mubr.f32.gmra.mrb[0].mxu0 %v164
    %v237 = vpop.f32.mrb[0].mxu0
    %v238 = vadd.f32 0.0, %v237
    %v239 = vpop.f32.mrb[0].mxu0
    %240 = vdwg.mxu0
    %vm241 = vcmask 261120
    %v242 = vsel %vm241, %v233, 0.0
    %vm243 = vcmask 257024
    %v244 = vsel %vm243, %v238, 0.0
    %v245 = vadd.f32 %v242, %v244
    %v246 = vrot.slane %v245, 4
    %v247 = vadd.f32 %v245, %v246
    %v248 = vrot.slane %v247, 2
    %v249 = vadd.f32 %v247, %v248
    %v250 = vrot.slane %v249, 1
    %v251 = vadd.f32 %v249, %v250
    %v252 = vrcp.pop 12.0
    %v253 = vmul.f32 %v251, %v252
    %v254 = vsub.f32 %v233, %v253
    %v255 = vsub.f32 %v238, %v253
    %v256 = vmul.f32 %v254, %v254
    %v257 = vmul.f32 %v255, %v255
    %v258 = vsel %vm241, %v256, 0.0
    %v259 = vsel %vm243, %v257, 0.0
    %v260 = vadd.f32 %v258, %v259
    %v261 = vrot.slane %v260, 4
    %v262 = vadd.f32 %v260, %v261
    %v263 = vrot.slane %v262, 2
    %v264 = vadd.f32 %v262, %v263
    %v265 = vrot.slane %v264, 1
    %v266 = vadd.f32 %v264, %v265
    %v267 = vmul.f32 %v266, %v252
    %v268 = vadd.f32 %v267, 1e-05
    %v269 = vrsqrt.pop %v268
    %v270 = vmul.f32 %v254, %v269
    %v271 = vmul.f32 %v255, %v269
    %v272 = vlaneseq
    %v273 = vshrl.u32 %v272, 7
    %v274 = vsub.s32 0, %v273
    %v275 = vrot.slane %v50, %v274
    %v276 = vmul.f32 %v270, %v275
    %v277 = vmul.f32 %v271, %v275
    %v278 = vlaneseq
    %v279 = vshrl.u32 %v278, 7
    %v280 = vsub.s32 0, %v279
    %v281 = vrot.slane %v51, %v280
    %v282 = vadd.f32 %v276, %v281
    %v283 = vadd.f32 %v277, %v281
    %v284 = vmax.f32 %v282, 0.0
    %v285 = vmax.f32 %v283, 0.0
    %v287 = vsel %vm241, %v284, 0
    %v290 = vsel %vm241, %v285, 0
    %292 = vmatprep.subr.mxu0 0.0
    %293 = vmatpush1.msra.mxu0 %v28
    %294 = vmatprep.subr.mxu0 0.0
    %295 = vmatpush1.msra.mxu0 %v29
    %296 = vmatprep.subr.mxu0 0.0
    %297 = vmatpush1.msra.mxu0 %v30
    %298 = vmatprep.subr.mxu0 0.0
    %299 = vmatpush1.msra.mxu0 %v31
    %300 = vmatprep.subr.mxu0 0.0
    %301 = vmatpush1.msra.mxu0 0.0
    %302 = vmatprep.subr.mxu0 0.0
    %303 = vmatpush1.msra.mxu0 0.0
    %304 = vmatprep.subr.mxu0 0.0
    %305 = vmatpush1.msra.mxu0 0.0
    %306 = vmatprep.subr.mxu0 0.0
    %307 = vmatpush1.msra.mxu0 0.0
    %308 = vmatprep.subr.mxu0 0.0
    %309 = vmatpush1.msra.mxu0 0.0
    %310 = vmatprep.subr.mxu0 0.0
    %311 = vmatpush1.msra.mxu0 0.0
    %312 = vmatprep.subr.mxu0 0.0
    %313 = vmatpush1.msra.mxu0 0.0
    %314 = vmatprep.subr.mxu0 0.0
    %315 = vmatpush1.msra.mxu0 0.0
    %316 = vmatprep.subr.mxu0 0.0
    %317 = vmatpush1.msra.mxu0 0.0
    %318 = vmatprep.subr.mxu0 0.0
    %319 = vmatpush1.msra.mxu0 0.0
    %320 = vmatprep.subr.mxu0 0.0
    %321 = vmatpush1.msra.mxu0 0.0
    %322 = vmatprep.subr.mxu0 0.0
    %323 = vmatpush1.msra.mxu0 0.0
    %324 = vmatprep.subr.mxu0 0.0
    %325 = vmatpush1.msra.mxu0 0.0
    %326 = vmatprep.subr.mxu0 0.0
    %327 = vmatpush1.msra.mxu0 0.0
    %328 = vmatprep.subr.mxu0 0.0
    %329 = vmatpush1.msra.mxu0 0.0
    %330 = vmatprep.subr.mxu0 0.0
    %331 = vmatpush1.msra.mxu0 0.0
    %332 = vmatprep.subr.mxu0 0.0
    %333 = vmatpush1.msra.mxu0 0.0
    %334 = vmatprep.subr.mxu0 0.0
    %335 = vmatpush1.msra.mxu0 0.0
    %336 = vmatprep.subr.mxu0 0.0
    %337 = vmatpush1.msra.mxu0 0.0
    %338 = vmatprep.subr.mxu0 0.0
    %339 = vmatpush1.msra.mxu0 0.0
    %340 = vmatprep.subr.mxu0 0.0
    %341 = vmatpush1.msra.mxu0 0.0
    %342 = vmatprep.subr.mxu0 0.0
    %343 = vmatpush1.msra.mxu0 0.0
    %344 = vmatprep.subr.mxu0 0.0
    %345 = vmatpush1.msra.mxu0 0.0
    %346 = vmatprep.subr.mxu0 0.0
    %347 = vmatpush1.msra.mxu0 0.0
    %348 = vmatprep.subr.mxu0 0.0
    %349 = vmatpush1.msra.mxu0 0.0
    %350 = vmatprep.subr.mxu0 0.0
    %351 = vmatpush1.msra.mxu0 0.0
    %352 = vmatprep.subr.mxu0 0.0
    %353 = vmatpush1.msra.mxu0 0.0
    %354 = vmatprep.subr.mxu0 0.0
    %355 = vmatpush1.msra.mxu0 0.0
    %356 = vmatprep.mubr.f32.mxu0 0.0
    %357 = vmatmul.mubr.f32.gmra.mrb[0].mxu0 %v287
    %v358 = vpop.f32.mrb[0].mxu0
    %v359 = vadd.f32 0.0, %v358
    %v360 = vpop.f32.mrb[0].mxu0
    %361 = vmatprep.mubr.f32.mxu0 0.0
    %362 = vmatmul.mubr.f32.gmra.mrb[0].mxu0 %v290
    %v363 = vpop.f32.mrb[0].mxu0
    %v364 = vadd.f32 0.0, %v363
    %v365 = vpop.f32.mrb[0].mxu0
    %366 = vdwg.mxu0
    %v367 = vlaneseq
    %v368 = vshrl.u32 %v367, 7
    %v369 = vsub.s32 0, %v368
    %v370 = vrot.slane %v53, %v369
    %v371 = vmul.f32 %v359, %v370
    %v372 = vmul.f32 %v364, %v370
    %v373 = vsel %vm241, %v371, 0.0
    %374 = vadd.xlane.f32.xlu0 %v373
    %v375 = vpop.xlane.xlu0 %374
    %v376 = vsel %vm243, %v372, 0.0
    %377 = vadd.xlane.f32.xlu0 %v376
    %v378 = vpop.xlane.xlu0 %377
    %v380 = vsel %vm241, %v52, 0
    %v383 = vsel %vm241, %v359, 0
    %v386 = vsel %vm241, %v364, 0
    %388 = vmatprep.subr.mxu0 0.0
    %389 = vmatpush1.xpose.msra.mxu0 %v383
    %390 = vmatprep.subr.mxu0 0.0
    %391 = vmatpush1.xpose.msra.mxu0 %v386
    %392 = vmatprep.subr.mxu0 0.0
    %393 = vmatpush1.xpose.msra.mxu0 0.0
    %394 = vmatprep.subr.mxu0 0.0
    %395 = vmatpush1.xpose.msra.mxu0 0.0
    %396 = vmatprep.subr.mxu0 0.0
    %397 = vmatpush1.xpose.msra.mxu0 0.0
    %398 = vmatprep.subr.mxu0 0.0
    %399 = vmatpush1.xpose.msra.mxu0 0.0
    %400 = vmatprep.subr.mxu0 0.0
    %401 = vmatpush1.xpose.msra.mxu0 0.0
    %402 = vmatprep.subr.mxu0 0.0
    %403 = vmatpush1.xpose.msra.mxu0 0.0
    %404 = vmatprep.subr.mxu0 0.0
    %405 = vmatpush1.xpose.msra.mxu0 0.0
    %406 = vmatprep.subr.mxu0 0.0
    %407 = vmatpush1.xpose.msra.mxu0 0.0
    %408 = vmatprep.subr.mxu0 0.0
    %409 = vmatpush1.xpose.msra.mxu0 0.0
    %410 = vmatprep.subr.mxu0 0.0
    %411 = vmatpush1.xpose.msra.mxu0 0.0
    %412 = vmatprep.subr.mxu0 0.0
    %413 = vmatpush1.xpose.msra.mxu0 0.0
    %414 = vmatprep.subr.mxu0 0.0
    %415 = vmatpush1.xpose.msra.mxu0 0.0
    %416 = vmatprep.subr.mxu0 0.0
    %417 = vmatpush1.xpose.msra.mxu0 0.0
    %418 = vmatprep.subr.mxu0 0.0
    %419 = vmatpush1.xpose.msra.mxu0 0.0
    %420 = vmatprep.subr.mxu0 0.0
    %421 = vmatpush1.xpose.msra.mxu0 0.0
    %422 = vmatprep.subr.mxu0 0.0
    %423 = vmatpush1.xpose.msra.mxu0 0.0
    %424 = vmatprep.subr.mxu0 0.0
    %425 = vmatpush1.xpose.msra.mxu0 0.0
    %426 = vmatprep.subr.mxu0 0.0
    %427 = vmatpush1.xpose.msra.mxu0 0.0
    %428 = vmatprep.subr.mxu0 0.0
    %429 = vmatpush1.xpose.msra.mxu0 0.0
    %430 = vmatprep.subr.mxu0 0.0
    %431 = vmatpush1.xpose.msra.mxu0 0.0
    %432 = vmatprep.subr.mxu0 0.0
    %433 = vmatpush1.xpose.msra.mxu0 0.0
    %434 = vmatprep.subr.mxu0 0.0
    %435 = vmatpush1.xpose.msra.mxu0 0.0
    %436 = vmatprep.subr.mxu0 0.0
    %437 = vmatpush1.xpose.msra.mxu0 0.0
    %438 = vmatprep.subr.mxu0 0.0
    %439 = vmatpush1.xpose.msra.mxu0 0.0
    %440 = vmatprep.subr.mxu0 0.0
    %441 = vmatpush1.xpose.msra.mxu0 0.0
    %442 = vmatprep.subr.mxu0 0.0
    %443 = vmatpush1.xpose.msra.mxu0 0.0
    %444 = vmatprep.subr.mxu0 0.0
    %445 = vmatpush1.xpose.msra.mxu0 0.0
    %446 = vmatprep.subr.mxu0 0.0
    %447 = vmatpush1.xpose.msra.mxu0 0.0
    %448 = vmatprep.subr.mxu0 0.0
    %449 = vmatpush1.xpose.msra.mxu0 0.0
    %450 = vmatprep.subr.mxu0 0.0
    %451 = vmatpush1.xpose.msra.mxu0 0.0
    %452 = vmatprep.mubr.f32.mxu0 0.0
    %453 = vmatmul.mubr.f32.gmra.mrb[0].mxu0 %v380
    %v454 = vpop.f32.mrb[0].mxu0
    %v455 = vadd.f32 0.0, %v454
    %v456 = vpop.f32.mrb[0].mxu0
    %457 = vdwg.mxu0
    %v458 = vlaneseq
    %v459 = vshrl.u32 %v458, 7
    %v460 = vsub.s32 0, %v459
    %v461 = vrot.slane %v455, %v460
    %v462 = vadd.f32 %v375, %v461
    %v463 = vadd.f32 %v378, %v461
    %vm464 = vcmp.gt.f32.partialorder %v462, 0.0
    %vm465 = vcmp.gt.f32.partialorder %v463, 0.0
    %v466 = vmul.f32 %v462, 0.2
    %v467 = vmul.f32 %v463, 0.2
    %v468 = vsel %vm464, %v462, %v466
    %v469 = vsel %vm465, %v463, %v467
    %v470 = vsel %vm23, %v468, -1e+30
    %v471 = vsel %vm24, %v469, -1e+30
    %v472 = vsel %vm73, %v470, -inf
    %473 = vmax.xlane.f32.xlu0 %v472
    %v474 = vpop.xlane.xlu0 %473
    %vm475 = vcmask 93184
    %v476 = vsel %vm475, %v471, -inf
    %477 = vmax.xlane.f32.xlu0 %v476
    %v478 = vpop.xlane.xlu0 %477
    %v479 = vsub.f32 %v470, %v474
    %v480 = vsub.f32 %v471, %v478
    %v481 = vmul.f32 %v479, 1.442695
    %v482 = vpow.pop %v481
    %v483 = vmul.f32 %v480, 1.442695
    %v484 = vpow.pop %v483
    %v485 = vsel %vm73, %v482, 0.0
    %486 = vadd.xlane.f32.xlu0 %v485
    %v487 = vpop.xlane.xlu0 %486
    %v488 = vsel %vm475, %v484, 0.0
    %489 = vadd.xlane.f32.xlu0 %v488
    %v490 = vpop.xlane.xlu0 %489
    %v491 = vrcp.pop %v487
    %v492 = vrcp.pop %v490
    %v493 = vmul.f32 %v482, %v491
    %v494 = vmul.f32 %v484, %v492
    %v496 = vsel %vm73, %v493, 0
    %v499 = vsel %vm73, %v494, 0
    %v501 = vsel %vm80, %v364, 0
    %503 = vmatprep.subr.mxu0 0.0
    %504 = vmatpush1.msra.mxu0 %v359
    %505 = vmatprep.subr.mxu0 0.0
    %506 = vmatpush1.msra.mxu0 %v501
    %507 = vmatprep.subr.mxu0 0.0
    %508 = vmatpush1.msra.mxu0 0.0
    %509 = vmatprep.subr.mxu0 0.0
    %510 = vmatpush1.msra.mxu0 0.0
    %511 = vmatprep.subr.mxu0 0.0
    %512 = vmatpush1.msra.mxu0 0.0
    %513 = vmatprep.subr.mxu0 0.0
    %514 = vmatpush1.msra.mxu0 0.0
    %515 = vmatprep.subr.mxu0 0.0
    %516 = vmatpush1.msra.mxu0 0.0
    %517 = vmatprep.subr.mxu0 0.0
    %518 = vmatpush1.msra.mxu0 0.0
    %519 = vmatprep.subr.mxu0 0.0
    %520 = vmatpush1.msra.mxu0 0.0
    %521 = vmatprep.subr.mxu0 0.0
    %522 = vmatpush1.msra.mxu0 0.0
    %523 = vmatprep.subr.mxu0 0.0
    %524 = vmatpush1.msra.mxu0 0.0
    %525 = vmatprep.subr.mxu0 0.0
    %526 = vmatpush1.msra.mxu0 0.0
    %527 = vmatprep.subr.mxu0 0.0
    %528 = vmatpush1.msra.mxu0 0.0
    %529 = vmatprep.subr.mxu0 0.0
    %530 = vmatpush1.msra.mxu0 0.0
    %531 = vmatprep.subr.mxu0 0.0
    %532 = vmatpush1.msra.mxu0 0.0
    %533 = vmatprep.subr.mxu0 0.0
    %534 = vmatpush1.msra.mxu0 0.0
    %535 = vmatprep.subr.mxu0 0.0
    %536 = vmatpush1.msra.mxu0 0.0
    %537 = vmatprep.subr.mxu0 0.0
    %538 = vmatpush1.msra.mxu0 0.0
    %539 = vmatprep.subr.mxu0 0.0
    %540 = vmatpush1.msra.mxu0 0.0
    %541 = vmatprep.subr.mxu0 0.0
    %542 = vmatpush1.msra.mxu0 0.0
    %543 = vmatprep.subr.mxu0 0.0
    %544 = vmatpush1.msra.mxu0 0.0
    %545 = vmatprep.subr.mxu0 0.0
    %546 = vmatpush1.msra.mxu0 0.0
    %547 = vmatprep.subr.mxu0 0.0
    %548 = vmatpush1.msra.mxu0 0.0
    %549 = vmatprep.subr.mxu0 0.0
    %550 = vmatpush1.msra.mxu0 0.0
    %551 = vmatprep.subr.mxu0 0.0
    %552 = vmatpush1.msra.mxu0 0.0
    %553 = vmatprep.subr.mxu0 0.0
    %554 = vmatpush1.msra.mxu0 0.0
    %555 = vmatprep.subr.mxu0 0.0
    %556 = vmatpush1.msra.mxu0 0.0
    %557 = vmatprep.subr.mxu0 0.0
    %558 = vmatpush1.msra.mxu0 0.0
    %559 = vmatprep.subr.mxu0 0.0
    %560 = vmatpush1.msra.mxu0 0.0
    %561 = vmatprep.subr.mxu0 0.0
    %562 = vmatpush1.msra.mxu0 0.0
    %563 = vmatprep.subr.mxu0 0.0
    %564 = vmatpush1.msra.mxu0 0.0
    %565 = vmatprep.subr.mxu0 0.0
    %566 = vmatpush1.msra.mxu0 0.0
    %567 = vmatprep.mubr.f32.mxu0 0.0
    %568 = vmatmul.mubr.f32.gmra.mrb[0].mxu0 %v496
    %v569 = vpop.f32.mrb[0].mxu0
    %v570 = vadd.f32 0.0, %v569
    %v571 = vpop.f32.mrb[0].mxu0
    %572 = vmatprep.mubr.f32.mxu0 0.0
    %573 = vmatmul.mubr.f32.gmra.mrb[0].mxu0 %v499
    %v574 = vpop.f32.mrb[0].mxu0
    %v575 = vadd.f32 0.0, %v574
    %v576 = vpop.f32.mrb[0].mxu0
    %577 = vdwg.mxu0
    %v578 = vsel %vm241, %v570, 0.0
    %v579 = vsel %vm243, %v575, 0.0
    %v580 = vadd.f32 %v578, %v579
    %v581 = vrot.slane %v580, 4
    %v582 = vadd.f32 %v580, %v581
    %v583 = vrot.slane %v582, 2
    %v584 = vadd.f32 %v582, %v583
    %v585 = vrot.slane %v584, 1
    %v586 = vadd.f32 %v584, %v585
    %v587 = vmul.f32 %v586, %v252
    %v588 = vsub.f32 %v570, %v587
    %v589 = vsub.f32 %v575, %v587
    %v590 = vmul.f32 %v588, %v588
    %v591 = vmul.f32 %v589, %v589
    %v592 = vsel %vm241, %v590, 0.0
    %v593 = vsel %vm243, %v591, 0.0
    %v594 = vadd.f32 %v592, %v593
    %v595 = vrot.slane %v594, 4
    %v596 = vadd.f32 %v594, %v595
    %v597 = vrot.slane %v596, 2
    %v598 = vadd.f32 %v596, %v597
    %v599 = vrot.slane %v598, 1
    %v600 = vadd.f32 %v598, %v599
    %v601 = vmul.f32 %v600, %v252
    %v602 = vadd.f32 %v601, 1e-05
    %v603 = vrsqrt.pop %v602
    %v604 = vmul.f32 %v588, %v603
    %v605 = vmul.f32 %v589, %v603
    %v606 = vlaneseq
    %v607 = vshrl.u32 %v606, 7
    %v608 = vsub.s32 0, %v607
    %v609 = vrot.slane %v54, %v608
    %v610 = vmul.f32 %v604, %v609
    %v611 = vmul.f32 %v605, %v609
    %v612 = vlaneseq
    %v613 = vshrl.u32 %v612, 7
    %v614 = vsub.s32 0, %v613
    %v615 = vrot.slane %v55, %v614
    %v616 = vadd.f32 %v610, %v615
    %v617 = vadd.f32 %v611, %v615
    %v618 = vmax.f32 %v616, 0.0
    %v619 = vmax.f32 %v617, 0.0
    %v621 = vsel %vm241, %v618, 0
    %v624 = vsel %vm241, %v619, 0
    %626 = vmatprep.subr.mxu0 0.0
    %627 = vmatpush1.msra.mxu0 %v32
    %628 = vmatprep.subr.mxu0 0.0
    %629 = vmatpush1.msra.mxu0 %v33
    %630 = vmatprep.subr.mxu0 0.0
    %631 = vmatpush1.msra.mxu0 %v34
    %632 = vmatprep.subr.mxu0 0.0
    %633 = vmatpush1.msra.mxu0 %v35
    %634 = vmatprep.subr.mxu0 0.0
    %635 = vmatpush1.msra.mxu0 0.0
    %636 = vmatprep.subr.mxu0 0.0
    %637 = vmatpush1.msra.mxu0 0.0
    %638 = vmatprep.subr.mxu0 0.0
    %639 = vmatpush1.msra.mxu0 0.0
    %640 = vmatprep.subr.mxu0 0.0
    %641 = vmatpush1.msra.mxu0 0.0
    %642 = vmatprep.subr.mxu0 0.0
    %643 = vmatpush1.msra.mxu0 0.0
    %644 = vmatprep.subr.mxu0 0.0
    %645 = vmatpush1.msra.mxu0 0.0
    %646 = vmatprep.subr.mxu0 0.0
    %647 = vmatpush1.msra.mxu0 0.0
    %648 = vmatprep.subr.mxu0 0.0
    %649 = vmatpush1.msra.mxu0 0.0
    %650 = vmatprep.subr.mxu0 0.0
    %651 = vmatpush1.msra.mxu0 0.0
    %652 = vmatprep.subr.mxu0 0.0
    %653 = vmatpush1.msra.mxu0 0.0
    %654 = vmatprep.subr.mxu0 0.0
    %655 = vmatpush1.msra.mxu0 0.0
    %656 = vmatprep.subr.mxu0 0.0
    %657 = vmatpush1.msra.mxu0 0.0
    %658 = vmatprep.subr.mxu0 0.0
    %659 = vmatpush1.msra.mxu0 0.0
    %660 = vmatprep.subr.mxu0 0.0
    %661 = vmatpush1.msra.mxu0 0.0
    %662 = vmatprep.subr.mxu0 0.0
    %663 = vmatpush1.msra.mxu0 0.0
    %664 = vmatprep.subr.mxu0 0.0
    %665 = vmatpush1.msra.mxu0 0.0
    %666 = vmatprep.subr.mxu0 0.0
    %667 = vmatpush1.msra.mxu0 0.0
    %668 = vmatprep.subr.mxu0 0.0
    %669 = vmatpush1.msra.mxu0 0.0
    %670 = vmatprep.subr.mxu0 0.0
    %671 = vmatpush1.msra.mxu0 0.0
    %672 = vmatprep.subr.mxu0 0.0
    %673 = vmatpush1.msra.mxu0 0.0
    %674 = vmatprep.subr.mxu0 0.0
    %675 = vmatpush1.msra.mxu0 0.0
    %676 = vmatprep.subr.mxu0 0.0
    %677 = vmatpush1.msra.mxu0 0.0
    %678 = vmatprep.subr.mxu0 0.0
    %679 = vmatpush1.msra.mxu0 0.0
    %680 = vmatprep.subr.mxu0 0.0
    %681 = vmatpush1.msra.mxu0 0.0
    %682 = vmatprep.subr.mxu0 0.0
    %683 = vmatpush1.msra.mxu0 0.0
    %684 = vmatprep.subr.mxu0 0.0
    %685 = vmatpush1.msra.mxu0 0.0
    %686 = vmatprep.subr.mxu0 0.0
    %687 = vmatpush1.msra.mxu0 0.0
    %688 = vmatprep.subr.mxu0 0.0
    %689 = vmatpush1.msra.mxu0 0.0
    %690 = vmatprep.mubr.f32.mxu0 0.0
    %691 = vmatmul.mubr.f32.gmra.mrb[0].mxu0 %v621
    %v692 = vpop.f32.mrb[0].mxu0
    %v693 = vadd.f32 0.0, %v692
    %v694 = vpop.f32.mrb[0].mxu0
    %695 = vmatprep.mubr.f32.mxu0 0.0
    %696 = vmatmul.mubr.f32.gmra.mrb[0].mxu0 %v624
    %v697 = vpop.f32.mrb[0].mxu0
    %v698 = vadd.f32 0.0, %v697
    %v699 = vpop.f32.mrb[0].mxu0
    %700 = vdwg.mxu0
    %v701 = vlaneseq
    %v702 = vshrl.u32 %v701, 7
    %v703 = vsub.s32 0, %v702
    %v704 = vrot.slane %v57, %v703
    %v705 = vmul.f32 %v693, %v704
    %v706 = vmul.f32 %v698, %v704
    %v707 = vsel %vm241, %v705, 0.0
    %708 = vadd.xlane.f32.xlu0 %v707
    %v709 = vpop.xlane.xlu0 %708
    %v710 = vsel %vm243, %v706, 0.0
    %711 = vadd.xlane.f32.xlu0 %v710
    %v712 = vpop.xlane.xlu0 %711
    %v714 = vsel %vm241, %v56, 0
    %v717 = vsel %vm241, %v693, 0
    %v720 = vsel %vm241, %v698, 0
    %722 = vmatprep.subr.mxu0 0.0
    %723 = vmatpush1.xpose.msra.mxu0 %v717
    %724 = vmatprep.subr.mxu0 0.0
    %725 = vmatpush1.xpose.msra.mxu0 %v720
    %726 = vmatprep.subr.mxu0 0.0
    %727 = vmatpush1.xpose.msra.mxu0 0.0
    %728 = vmatprep.subr.mxu0 0.0
    %729 = vmatpush1.xpose.msra.mxu0 0.0
    %730 = vmatprep.subr.mxu0 0.0
    %731 = vmatpush1.xpose.msra.mxu0 0.0
    %732 = vmatprep.subr.mxu0 0.0
    %733 = vmatpush1.xpose.msra.mxu0 0.0
    %734 = vmatprep.subr.mxu0 0.0
    %735 = vmatpush1.xpose.msra.mxu0 0.0
    %736 = vmatprep.subr.mxu0 0.0
    %737 = vmatpush1.xpose.msra.mxu0 0.0
    %738 = vmatprep.subr.mxu0 0.0
    %739 = vmatpush1.xpose.msra.mxu0 0.0
    %740 = vmatprep.subr.mxu0 0.0
    %741 = vmatpush1.xpose.msra.mxu0 0.0
    %742 = vmatprep.subr.mxu0 0.0
    %743 = vmatpush1.xpose.msra.mxu0 0.0
    %744 = vmatprep.subr.mxu0 0.0
    %745 = vmatpush1.xpose.msra.mxu0 0.0
    %746 = vmatprep.subr.mxu0 0.0
    %747 = vmatpush1.xpose.msra.mxu0 0.0
    %748 = vmatprep.subr.mxu0 0.0
    %749 = vmatpush1.xpose.msra.mxu0 0.0
    %750 = vmatprep.subr.mxu0 0.0
    %751 = vmatpush1.xpose.msra.mxu0 0.0
    %752 = vmatprep.subr.mxu0 0.0
    %753 = vmatpush1.xpose.msra.mxu0 0.0
    %754 = vmatprep.subr.mxu0 0.0
    %755 = vmatpush1.xpose.msra.mxu0 0.0
    %756 = vmatprep.subr.mxu0 0.0
    %757 = vmatpush1.xpose.msra.mxu0 0.0
    %758 = vmatprep.subr.mxu0 0.0
    %759 = vmatpush1.xpose.msra.mxu0 0.0
    %760 = vmatprep.subr.mxu0 0.0
    %761 = vmatpush1.xpose.msra.mxu0 0.0
    %762 = vmatprep.subr.mxu0 0.0
    %763 = vmatpush1.xpose.msra.mxu0 0.0
    %764 = vmatprep.subr.mxu0 0.0
    %765 = vmatpush1.xpose.msra.mxu0 0.0
    %766 = vmatprep.subr.mxu0 0.0
    %767 = vmatpush1.xpose.msra.mxu0 0.0
    %768 = vmatprep.subr.mxu0 0.0
    %769 = vmatpush1.xpose.msra.mxu0 0.0
    %770 = vmatprep.subr.mxu0 0.0
    %771 = vmatpush1.xpose.msra.mxu0 0.0
    %772 = vmatprep.subr.mxu0 0.0
    %773 = vmatpush1.xpose.msra.mxu0 0.0
    %774 = vmatprep.subr.mxu0 0.0
    %775 = vmatpush1.xpose.msra.mxu0 0.0
    %776 = vmatprep.subr.mxu0 0.0
    %777 = vmatpush1.xpose.msra.mxu0 0.0
    %778 = vmatprep.subr.mxu0 0.0
    %779 = vmatpush1.xpose.msra.mxu0 0.0
    %780 = vmatprep.subr.mxu0 0.0
    %781 = vmatpush1.xpose.msra.mxu0 0.0
    %782 = vmatprep.subr.mxu0 0.0
    %783 = vmatpush1.xpose.msra.mxu0 0.0
    %784 = vmatprep.subr.mxu0 0.0
    %785 = vmatpush1.xpose.msra.mxu0 0.0
    %786 = vmatprep.mubr.f32.mxu0 0.0
    %787 = vmatmul.mubr.f32.gmra.mrb[0].mxu0 %v714
    %v788 = vpop.f32.mrb[0].mxu0
    %v789 = vadd.f32 0.0, %v788
    %v790 = vpop.f32.mrb[0].mxu0
    %791 = vdwg.mxu0
    %v792 = vlaneseq
    %v793 = vshrl.u32 %v792, 7
    %v794 = vsub.s32 0, %v793
    %v795 = vrot.slane %v789, %v794
    %v796 = vadd.f32 %v709, %v795
    %v797 = vadd.f32 %v712, %v795
    %vm798 = vcmp.gt.f32.partialorder %v796, 0.0
    %vm799 = vcmp.gt.f32.partialorder %v797, 0.0
    %v800 = vmul.f32 %v796, 0.2
    %v801 = vmul.f32 %v797, 0.2
    %v802 = vsel %vm798, %v796, %v800
    %v803 = vsel %vm799, %v797, %v801
    %v804 = vsel %vm23, %v802, -1e+30
    %v805 = vsel %vm24, %v803, -1e+30
    %v806 = vsel %vm73, %v804, -inf
    %807 = vmax.xlane.f32.xlu0 %v806
    %v808 = vpop.xlane.xlu0 %807
    %v809 = vsel %vm475, %v805, -inf
    %810 = vmax.xlane.f32.xlu0 %v809
    %v811 = vpop.xlane.xlu0 %810
    %v812 = vsub.f32 %v804, %v808
    %v813 = vsub.f32 %v805, %v811
    %v814 = vmul.f32 %v812, 1.442695
    %v815 = vpow.pop %v814
    %v816 = vmul.f32 %v813, 1.442695
    %v817 = vpow.pop %v816
    %v818 = vsel %vm73, %v815, 0.0
    %819 = vadd.xlane.f32.xlu0 %v818
    %v820 = vpop.xlane.xlu0 %819
    %v821 = vsel %vm475, %v817, 0.0
    %822 = vadd.xlane.f32.xlu0 %v821
    %v823 = vpop.xlane.xlu0 %822
    %v824 = vrcp.pop %v820
    %v825 = vrcp.pop %v823
    %v826 = vmul.f32 %v815, %v824
    %v827 = vmul.f32 %v817, %v825
    %v828 = vsel %vm80, %v619, 0
    %830 = vmatprep.subr.mxu0 0.0
    %831 = vmatpush1.msra.mxu0 %v618
    %832 = vmatprep.subr.mxu0 0.0
    %833 = vmatpush1.msra.mxu0 %v828
    %834 = vmatprep.subr.mxu0 0.0
    %835 = vmatpush1.msra.mxu0 0.0
    %836 = vmatprep.subr.mxu0 0.0
    %837 = vmatpush1.msra.mxu0 0.0
    %838 = vmatprep.subr.mxu0 0.0
    %839 = vmatpush1.msra.mxu0 0.0
    %840 = vmatprep.subr.mxu0 0.0
    %841 = vmatpush1.msra.mxu0 0.0
    %842 = vmatprep.subr.mxu0 0.0
    %843 = vmatpush1.msra.mxu0 0.0
    %844 = vmatprep.subr.mxu0 0.0
    %845 = vmatpush1.msra.mxu0 0.0
    %846 = vmatprep.subr.mxu0 0.0
    %847 = vmatpush1.msra.mxu0 0.0
    %848 = vmatprep.subr.mxu0 0.0
    %849 = vmatpush1.msra.mxu0 0.0
    %850 = vmatprep.subr.mxu0 0.0
    %851 = vmatpush1.msra.mxu0 0.0
    %852 = vmatprep.subr.mxu0 0.0
    %853 = vmatpush1.msra.mxu0 0.0
    %854 = vmatprep.subr.mxu0 0.0
    %855 = vmatpush1.msra.mxu0 0.0
    %856 = vmatprep.subr.mxu0 0.0
    %857 = vmatpush1.msra.mxu0 0.0
    %858 = vmatprep.subr.mxu0 0.0
    %859 = vmatpush1.msra.mxu0 0.0
    %860 = vmatprep.subr.mxu0 0.0
    %861 = vmatpush1.msra.mxu0 0.0
    %862 = vmatprep.subr.mxu0 0.0
    %863 = vmatpush1.msra.mxu0 0.0
    %864 = vmatprep.subr.mxu0 0.0
    %865 = vmatpush1.msra.mxu0 0.0
    %866 = vmatprep.subr.mxu0 0.0
    %867 = vmatpush1.msra.mxu0 0.0
    %868 = vmatprep.subr.mxu0 0.0
    %869 = vmatpush1.msra.mxu0 0.0
    %870 = vmatprep.subr.mxu0 0.0
    %871 = vmatpush1.msra.mxu0 0.0
    %872 = vmatprep.subr.mxu0 0.0
    %873 = vmatpush1.msra.mxu0 0.0
    %874 = vmatprep.subr.mxu0 0.0
    %875 = vmatpush1.msra.mxu0 0.0
    %876 = vmatprep.subr.mxu0 0.0
    %877 = vmatpush1.msra.mxu0 0.0
    %878 = vmatprep.subr.mxu0 0.0
    %879 = vmatpush1.msra.mxu0 0.0
    %880 = vmatprep.subr.mxu0 0.0
    %881 = vmatpush1.msra.mxu0 0.0
    %882 = vmatprep.subr.mxu0 0.0
    %883 = vmatpush1.msra.mxu0 0.0
    %884 = vmatprep.subr.mxu0 0.0
    %885 = vmatpush1.msra.mxu0 0.0
    %886 = vmatprep.subr.mxu0 0.0
    %887 = vmatpush1.msra.mxu0 0.0
    %888 = vmatprep.subr.mxu0 0.0
    %889 = vmatpush1.msra.mxu0 0.0
    %890 = vmatprep.subr.mxu0 0.0
    %891 = vmatpush1.msra.mxu0 0.0
    %892 = vmatprep.subr.mxu0 0.0
    %893 = vmatpush1.msra.mxu0 0.0
    %894 = vmatprep.mubr.f32.mxu0 0.0
    %895 = vmatmul.mubr.f32.gmra.mrb[0].mxu0 %v75
    %v896 = vpop.f32.mrb[0].mxu0
    %v897 = vadd.f32 0.0, %v896
    %v898 = vpop.f32.mrb[0].mxu0
    %899 = vmatprep.mubr.f32.mxu0 0.0
    %900 = vmatmul.mubr.f32.gmra.mrb[0].mxu0 %v78
    %v901 = vpop.f32.mrb[0].mxu0
    %v902 = vadd.f32 0.0, %v901
    %v903 = vpop.f32.mrb[0].mxu0
    %904 = vdwg.mxu0
    %v906 = vsel %vm73, %v826, 0
    %v909 = vsel %vm73, %v827, 0
    %v911 = vsel %vm80, %v698, 0
    %913 = vmatprep.subr.mxu0 0.0
    %914 = vmatpush1.msra.mxu0 %v693
    %915 = vmatprep.subr.mxu0 0.0
    %916 = vmatpush1.msra.mxu0 %v911
    %917 = vmatprep.subr.mxu0 0.0
    %918 = vmatpush1.msra.mxu0 0.0
    %919 = vmatprep.subr.mxu0 0.0
    %920 = vmatpush1.msra.mxu0 0.0
    %921 = vmatprep.subr.mxu0 0.0
    %922 = vmatpush1.msra.mxu0 0.0
    %923 = vmatprep.subr.mxu0 0.0
    %924 = vmatpush1.msra.mxu0 0.0
    %925 = vmatprep.subr.mxu0 0.0
    %926 = vmatpush1.msra.mxu0 0.0
    %927 = vmatprep.subr.mxu0 0.0
    %928 = vmatpush1.msra.mxu0 0.0
    %929 = vmatprep.subr.mxu0 0.0
    %930 = vmatpush1.msra.mxu0 0.0
    %931 = vmatprep.subr.mxu0 0.0
    %932 = vmatpush1.msra.mxu0 0.0
    %933 = vmatprep.subr.mxu0 0.0
    %934 = vmatpush1.msra.mxu0 0.0
    %935 = vmatprep.subr.mxu0 0.0
    %936 = vmatpush1.msra.mxu0 0.0
    %937 = vmatprep.subr.mxu0 0.0
    %938 = vmatpush1.msra.mxu0 0.0
    %939 = vmatprep.subr.mxu0 0.0
    %940 = vmatpush1.msra.mxu0 0.0
    %941 = vmatprep.subr.mxu0 0.0
    %942 = vmatpush1.msra.mxu0 0.0
    %943 = vmatprep.subr.mxu0 0.0
    %944 = vmatpush1.msra.mxu0 0.0
    %945 = vmatprep.subr.mxu0 0.0
    %946 = vmatpush1.msra.mxu0 0.0
    %947 = vmatprep.subr.mxu0 0.0
    %948 = vmatpush1.msra.mxu0 0.0
    %949 = vmatprep.subr.mxu0 0.0
    %950 = vmatpush1.msra.mxu0 0.0
    %951 = vmatprep.subr.mxu0 0.0
    %952 = vmatpush1.msra.mxu0 0.0
    %953 = vmatprep.subr.mxu0 0.0
    %954 = vmatpush1.msra.mxu0 0.0
    %955 = vmatprep.subr.mxu0 0.0
    %956 = vmatpush1.msra.mxu0 0.0
    %957 = vmatprep.subr.mxu0 0.0
    %958 = vmatpush1.msra.mxu0 0.0
    %959 = vmatprep.subr.mxu0 0.0
    %960 = vmatpush1.msra.mxu0 0.0
    %961 = vmatprep.subr.mxu0 0.0
    %962 = vmatpush1.msra.mxu0 0.0
    %963 = vmatprep.subr.mxu0 0.0
    %964 = vmatpush1.msra.mxu0 0.0
    %965 = vmatprep.subr.mxu0 0.0
    %966 = vmatpush1.msra.mxu0 0.0
    %967 = vmatprep.subr.mxu0 0.0
    %968 = vmatpush1.msra.mxu0 0.0
    %969 = vmatprep.subr.mxu0 0.0
    %970 = vmatpush1.msra.mxu0 0.0
    %971 = vmatprep.subr.mxu0 0.0
    %972 = vmatpush1.msra.mxu0 0.0
    %973 = vmatprep.subr.mxu0 0.0
    %974 = vmatpush1.msra.mxu0 0.0
    %975 = vmatprep.subr.mxu0 0.0
    %976 = vmatpush1.msra.mxu0 0.0
    %977 = vmatprep.mubr.f32.mxu0 0.0
    %978 = vmatmul.mubr.f32.gmra.mrb[0].mxu0 %v906
    %v979 = vpop.f32.mrb[0].mxu0
    %v980 = vadd.f32 %v897, %v979
    %v981 = vpop.f32.mrb[0].mxu0
    %982 = vmatprep.mubr.f32.mxu0 0.0
    %983 = vmatmul.mubr.f32.gmra.mrb[0].mxu0 %v909
    %v984 = vpop.f32.mrb[0].mxu0
    %v985 = vadd.f32 %v902, %v984
    %v986 = vpop.f32.mrb[0].mxu0
    %987 = vdwg.mxu0
    %v988 = vsel %vm241, %v980, 0.0
    %v989 = vsel %vm243, %v985, 0.0
    %v990 = vadd.f32 %v988, %v989
    %v991 = vrot.slane %v990, 4
    %v992 = vadd.f32 %v990, %v991
    %v993 = vrot.slane %v992, 2
    %v994 = vadd.f32 %v992, %v993
    %v995 = vrot.slane %v994, 1
    %v996 = vadd.f32 %v994, %v995
    %v997 = vmul.f32 %v996, %v252
    %v998 = vsub.f32 %v980, %v997
    %v999 = vsub.f32 %v985, %v997
    %v1000 = vmul.f32 %v998, %v998
    %v1001 = vmul.f32 %v999, %v999
    %v1002 = vsel %vm241, %v1000, 0.0
    %v1003 = vsel %vm243, %v1001, 0.0
    %v1004 = vadd.f32 %v1002, %v1003
    %v1005 = vrot.slane %v1004, 4
    %v1006 = vadd.f32 %v1004, %v1005
    %v1007 = vrot.slane %v1006, 2
    %v1008 = vadd.f32 %v1006, %v1007
    %v1009 = vrot.slane %v1008, 1
    %v1010 = vadd.f32 %v1008, %v1009
    %v1011 = vmul.f32 %v1010, %v252
    %v1012 = vadd.f32 %v1011, 1e-05
    %v1013 = vrsqrt.pop %v1012
    %v1014 = vmul.f32 %v998, %v1013
    %v1015 = vmul.f32 %v999, %v1013
    %v1016 = vlaneseq
    %v1017 = vshrl.u32 %v1016, 7
    %v1018 = vsub.s32 0, %v1017
    %v1019 = vrot.slane %v58, %v1018
    %v1020 = vmul.f32 %v1014, %v1019
    %v1021 = vmul.f32 %v1015, %v1019
    %v1022 = vlaneseq
    %v1023 = vshrl.u32 %v1022, 7
    %v1024 = vsub.s32 0, %v1023
    %v1025 = vrot.slane %v59, %v1024
    %v1026 = vadd.f32 %v1020, %v1025
    %v1027 = vadd.f32 %v1021, %v1025
    %v1028 = vmax.f32 %v1026, 0.0
    %v1029 = vmax.f32 %v1027, 0.0
    %v1031 = vsel %vm241, %v1028, 0
    %v1034 = vsel %vm241, %v1029, 0
    %1036 = vmatprep.subr.mxu0 0.0
    %1037 = vmatpush1.msra.mxu0 %v36
    %1038 = vmatprep.subr.mxu0 0.0
    %1039 = vmatpush1.msra.mxu0 %v37
    %1040 = vmatprep.subr.mxu0 0.0
    %1041 = vmatpush1.msra.mxu0 %v38
    %1042 = vmatprep.subr.mxu0 0.0
    %1043 = vmatpush1.msra.mxu0 %v39
    %1044 = vmatprep.subr.mxu0 0.0
    %1045 = vmatpush1.msra.mxu0 0.0
    %1046 = vmatprep.subr.mxu0 0.0
    %1047 = vmatpush1.msra.mxu0 0.0
    %1048 = vmatprep.subr.mxu0 0.0
    %1049 = vmatpush1.msra.mxu0 0.0
    %1050 = vmatprep.subr.mxu0 0.0
    %1051 = vmatpush1.msra.mxu0 0.0
    %1052 = vmatprep.subr.mxu0 0.0
    %1053 = vmatpush1.msra.mxu0 0.0
    %1054 = vmatprep.subr.mxu0 0.0
    %1055 = vmatpush1.msra.mxu0 0.0
    %1056 = vmatprep.subr.mxu0 0.0
    %1057 = vmatpush1.msra.mxu0 0.0
    %1058 = vmatprep.subr.mxu0 0.0
    %1059 = vmatpush1.msra.mxu0 0.0
    %1060 = vmatprep.subr.mxu0 0.0
    %1061 = vmatpush1.msra.mxu0 0.0
    %1062 = vmatprep.subr.mxu0 0.0
    %1063 = vmatpush1.msra.mxu0 0.0
    %1064 = vmatprep.subr.mxu0 0.0
    %1065 = vmatpush1.msra.mxu0 0.0
    %1066 = vmatprep.subr.mxu0 0.0
    %1067 = vmatpush1.msra.mxu0 0.0
    %1068 = vmatprep.subr.mxu0 0.0
    %1069 = vmatpush1.msra.mxu0 0.0
    %1070 = vmatprep.subr.mxu0 0.0
    %1071 = vmatpush1.msra.mxu0 0.0
    %1072 = vmatprep.subr.mxu0 0.0
    %1073 = vmatpush1.msra.mxu0 0.0
    %1074 = vmatprep.subr.mxu0 0.0
    %1075 = vmatpush1.msra.mxu0 0.0
    %1076 = vmatprep.subr.mxu0 0.0
    %1077 = vmatpush1.msra.mxu0 0.0
    %1078 = vmatprep.subr.mxu0 0.0
    %1079 = vmatpush1.msra.mxu0 0.0
    %1080 = vmatprep.subr.mxu0 0.0
    %1081 = vmatpush1.msra.mxu0 0.0
    %1082 = vmatprep.subr.mxu0 0.0
    %1083 = vmatpush1.msra.mxu0 0.0
    %1084 = vmatprep.subr.mxu0 0.0
    %1085 = vmatpush1.msra.mxu0 0.0
    %1086 = vmatprep.subr.mxu0 0.0
    %1087 = vmatpush1.msra.mxu0 0.0
    %1088 = vmatprep.subr.mxu0 0.0
    %1089 = vmatpush1.msra.mxu0 0.0
    %1090 = vmatprep.subr.mxu0 0.0
    %1091 = vmatpush1.msra.mxu0 0.0
    %1092 = vmatprep.subr.mxu0 0.0
    %1093 = vmatpush1.msra.mxu0 0.0
    %1094 = vmatprep.subr.mxu0 0.0
    %1095 = vmatpush1.msra.mxu0 0.0
    %1096 = vmatprep.subr.mxu0 0.0
    %1097 = vmatpush1.msra.mxu0 0.0
    %1098 = vmatprep.subr.mxu0 0.0
    %1099 = vmatpush1.msra.mxu0 0.0
    %1100 = vmatprep.mubr.f32.mxu0 0.0
    %1101 = vmatmul.mubr.f32.gmra.mrb[0].mxu0 %v1031
    %v1102 = vpop.f32.mrb[0].mxu0
    %v1103 = vadd.f32 %v1028, %v1102
    %v1104 = vpop.f32.mrb[0].mxu0
    %1105 = vmatprep.mubr.f32.mxu0 0.0
    %1106 = vmatmul.mubr.f32.gmra.mrb[0].mxu0 %v1034
    %v1107 = vpop.f32.mrb[0].mxu0
    %v1108 = vadd.f32 %v1029, %v1107
    %v1109 = vpop.f32.mrb[0].mxu0
    %1110 = vdwg.mxu0
    %v1111 = vlaneseq
    %v1112 = vshrl.u32 %v1111, 7
    %v1113 = vsub.s32 0, %v1112
    %v1114 = vrot.slane %v60, %v1113
    %v1116 = vsel %vm80, %v1108, 0
    %1118 = vmatprep.subr.mxu0 0.0
    %1119 = vmatpush1.msra.mxu0 %v1103
    %1120 = vmatprep.subr.mxu0 0.0
    %1121 = vmatpush1.msra.mxu0 %v1116
    %1122 = vmatprep.subr.mxu0 0.0
    %1123 = vmatpush1.msra.mxu0 0.0
    %1124 = vmatprep.subr.mxu0 0.0
    %1125 = vmatpush1.msra.mxu0 0.0
    %1126 = vmatprep.subr.mxu0 0.0
    %1127 = vmatpush1.msra.mxu0 0.0
    %1128 = vmatprep.subr.mxu0 0.0
    %1129 = vmatpush1.msra.mxu0 0.0
    %1130 = vmatprep.subr.mxu0 0.0
    %1131 = vmatpush1.msra.mxu0 0.0
    %1132 = vmatprep.subr.mxu0 0.0
    %1133 = vmatpush1.msra.mxu0 0.0
    %1134 = vmatprep.subr.mxu0 0.0
    %1135 = vmatpush1.msra.mxu0 0.0
    %1136 = vmatprep.subr.mxu0 0.0
    %1137 = vmatpush1.msra.mxu0 0.0
    %1138 = vmatprep.subr.mxu0 0.0
    %1139 = vmatpush1.msra.mxu0 0.0
    %1140 = vmatprep.subr.mxu0 0.0
    %1141 = vmatpush1.msra.mxu0 0.0
    %1142 = vmatprep.subr.mxu0 0.0
    %1143 = vmatpush1.msra.mxu0 0.0
    %1144 = vmatprep.subr.mxu0 0.0
    %1145 = vmatpush1.msra.mxu0 0.0
    %1146 = vmatprep.subr.mxu0 0.0
    %1147 = vmatpush1.msra.mxu0 0.0
    %1148 = vmatprep.subr.mxu0 0.0
    %1149 = vmatpush1.msra.mxu0 0.0
    %1150 = vmatprep.subr.mxu0 0.0
    %1151 = vmatpush1.msra.mxu0 0.0
    %1152 = vmatprep.subr.mxu0 0.0
    %1153 = vmatpush1.msra.mxu0 0.0
    %1154 = vmatprep.subr.mxu0 0.0
    %1155 = vmatpush1.msra.mxu0 0.0
    %1156 = vmatprep.subr.mxu0 0.0
    %1157 = vmatpush1.msra.mxu0 0.0
    %1158 = vmatprep.subr.mxu0 0.0
    %1159 = vmatpush1.msra.mxu0 0.0
    %1160 = vmatprep.subr.mxu0 0.0
    %1161 = vmatpush1.msra.mxu0 0.0
    %1162 = vmatprep.subr.mxu0 0.0
    %1163 = vmatpush1.msra.mxu0 0.0
    %1164 = vmatprep.subr.mxu0 0.0
    %1165 = vmatpush1.msra.mxu0 0.0
    %1166 = vmatprep.subr.mxu0 0.0
    %1167 = vmatpush1.msra.mxu0 0.0
    %1168 = vmatprep.subr.mxu0 0.0
    %1169 = vmatpush1.msra.mxu0 0.0
    %1170 = vmatprep.subr.mxu0 0.0
    %1171 = vmatpush1.msra.mxu0 0.0
    %1172 = vmatprep.subr.mxu0 0.0
    %1173 = vmatpush1.msra.mxu0 0.0
    %1174 = vmatprep.subr.mxu0 0.0
    %1175 = vmatpush1.msra.mxu0 0.0
    %1176 = vmatprep.subr.mxu0 0.0
    %1177 = vmatpush1.msra.mxu0 0.0
    %1178 = vmatprep.subr.mxu0 0.0
    %1179 = vmatpush1.msra.mxu0 0.0
    %1180 = vmatprep.subr.mxu0 0.0
    %1181 = vmatpush1.msra.mxu0 0.0
    %1182 = vmatprep.mubr.f32.mxu0 0.0
    %1183 = vmatmul.mubr.f32.gmra.mrb[0].mxu0 %v75
    %v1184 = vpop.f32.mrb[0].mxu0
    %v1185 = vadd.f32 %v1114, %v1184
    %v1186 = vpop.f32.mrb[0].mxu0
    %1187 = vmatprep.mubr.f32.mxu0 0.0
    %1188 = vmatmul.mubr.f32.gmra.mrb[0].mxu0 %v78
    %v1189 = vpop.f32.mrb[0].mxu0
    %v1190 = vadd.f32 %v1114, %v1189
    %v1191 = vpop.f32.mrb[0].mxu0
    %1192 = vdwg.mxu0
    %v1194 = vsel %vm241, %v1185, 0
    %v1197 = vsel %vm241, %v1190, 0
    %1199 = vmatprep.subr.mxu0 0.0
    %1200 = vmatpush1.msra.mxu0 %v40
    %1201 = vmatprep.subr.mxu0 0.0
    %1202 = vmatpush1.msra.mxu0 %v41
    %1203 = vmatprep.subr.mxu0 0.0
    %1204 = vmatpush1.msra.mxu0 %v42
    %1205 = vmatprep.subr.mxu0 0.0
    %1206 = vmatpush1.msra.mxu0 %v43
    %1207 = vmatprep.subr.mxu0 0.0
    %1208 = vmatpush1.msra.mxu0 0.0
    %1209 = vmatprep.subr.mxu0 0.0
    %1210 = vmatpush1.msra.mxu0 0.0
    %1211 = vmatprep.subr.mxu0 0.0
    %1212 = vmatpush1.msra.mxu0 0.0
    %1213 = vmatprep.subr.mxu0 0.0
    %1214 = vmatpush1.msra.mxu0 0.0
    %1215 = vmatprep.subr.mxu0 0.0
    %1216 = vmatpush1.msra.mxu0 0.0
    %1217 = vmatprep.subr.mxu0 0.0
    %1218 = vmatpush1.msra.mxu0 0.0
    %1219 = vmatprep.subr.mxu0 0.0
    %1220 = vmatpush1.msra.mxu0 0.0
    %1221 = vmatprep.subr.mxu0 0.0
    %1222 = vmatpush1.msra.mxu0 0.0
    %1223 = vmatprep.subr.mxu0 0.0
    %1224 = vmatpush1.msra.mxu0 0.0
    %1225 = vmatprep.subr.mxu0 0.0
    %1226 = vmatpush1.msra.mxu0 0.0
    %1227 = vmatprep.subr.mxu0 0.0
    %1228 = vmatpush1.msra.mxu0 0.0
    %1229 = vmatprep.subr.mxu0 0.0
    %1230 = vmatpush1.msra.mxu0 0.0
    %1231 = vmatprep.subr.mxu0 0.0
    %1232 = vmatpush1.msra.mxu0 0.0
    %1233 = vmatprep.subr.mxu0 0.0
    %1234 = vmatpush1.msra.mxu0 0.0
    %1235 = vmatprep.subr.mxu0 0.0
    %1236 = vmatpush1.msra.mxu0 0.0
    %1237 = vmatprep.subr.mxu0 0.0
    %1238 = vmatpush1.msra.mxu0 0.0
    %1239 = vmatprep.subr.mxu0 0.0
    %1240 = vmatpush1.msra.mxu0 0.0
    %1241 = vmatprep.subr.mxu0 0.0
    %1242 = vmatpush1.msra.mxu0 0.0
    %1243 = vmatprep.subr.mxu0 0.0
    %1244 = vmatpush1.msra.mxu0 0.0
    %1245 = vmatprep.subr.mxu0 0.0
    %1246 = vmatpush1.msra.mxu0 0.0
    %1247 = vmatprep.subr.mxu0 0.0
    %1248 = vmatpush1.msra.mxu0 0.0
    %1249 = vmatprep.subr.mxu0 0.0
    %1250 = vmatpush1.msra.mxu0 0.0
    %1251 = vmatprep.subr.mxu0 0.0
    %1252 = vmatpush1.msra.mxu0 0.0
    %1253 = vmatprep.subr.mxu0 0.0
    %1254 = vmatpush1.msra.mxu0 0.0
    %1255 = vmatprep.subr.mxu0 0.0
    %1256 = vmatpush1.msra.mxu0 0.0
    %1257 = vmatprep.subr.mxu0 0.0
    %1258 = vmatpush1.msra.mxu0 0.0
    %1259 = vmatprep.subr.mxu0 0.0
    %1260 = vmatpush1.msra.mxu0 0.0
    %1261 = vmatprep.subr.mxu0 0.0
    %1262 = vmatpush1.msra.mxu0 0.0
    %1263 = vmatprep.mubr.f32.mxu0 0.0
    %1264 = vmatmul.mubr.f32.gmra.mrb[0].mxu0 %v1194
    %v1265 = vpop.f32.mrb[0].mxu0
    %v1266 = vadd.f32 0.0, %v1265
    %v1267 = vpop.f32.mrb[0].mxu0
    %1268 = vmatprep.mubr.f32.mxu0 0.0
    %1269 = vmatmul.mubr.f32.gmra.mrb[0].mxu0 %v1197
    %v1270 = vpop.f32.mrb[0].mxu0
    %v1271 = vadd.f32 0.0, %v1270
    %v1272 = vpop.f32.mrb[0].mxu0
    %1273 = vdwg.mxu0
    %1274 = vmatprep.subr.mxu0 0.0
    %1275 = vmatpush1.msra.mxu0 %v44
    %1276 = vmatprep.subr.mxu0 0.0
    %1277 = vmatpush1.msra.mxu0 %v45
    %1278 = vmatprep.subr.mxu0 0.0
    %1279 = vmatpush1.msra.mxu0 %v46
    %1280 = vmatprep.subr.mxu0 0.0
    %1281 = vmatpush1.msra.mxu0 %v47
    %1282 = vmatprep.subr.mxu0 0.0
    %1283 = vmatpush1.msra.mxu0 0.0
    %1284 = vmatprep.subr.mxu0 0.0
    %1285 = vmatpush1.msra.mxu0 0.0
    %1286 = vmatprep.subr.mxu0 0.0
    %1287 = vmatpush1.msra.mxu0 0.0
    %1288 = vmatprep.subr.mxu0 0.0
    %1289 = vmatpush1.msra.mxu0 0.0
    %1290 = vmatprep.subr.mxu0 0.0
    %1291 = vmatpush1.msra.mxu0 0.0
    %1292 = vmatprep.subr.mxu0 0.0
    %1293 = vmatpush1.msra.mxu0 0.0
    %1294 = vmatprep.subr.mxu0 0.0
    %1295 = vmatpush1.msra.mxu0 0.0
    %1296 = vmatprep.subr.mxu0 0.0
    %1297 = vmatpush1.msra.mxu0 0.0
    %1298 = vmatprep.subr.mxu0 0.0
    %1299 = vmatpush1.msra.mxu0 0.0
    %1300 = vmatprep.subr.mxu0 0.0
    %1301 = vmatpush1.msra.mxu0 0.0
    %1302 = vmatprep.subr.mxu0 0.0
    %1303 = vmatpush1.msra.mxu0 0.0
    %1304 = vmatprep.subr.mxu0 0.0
    %1305 = vmatpush1.msra.mxu0 0.0
    %1306 = vmatprep.subr.mxu0 0.0
    %1307 = vmatpush1.msra.mxu0 0.0
    %1308 = vmatprep.subr.mxu0 0.0
    %1309 = vmatpush1.msra.mxu0 0.0
    %1310 = vmatprep.subr.mxu0 0.0
    %1311 = vmatpush1.msra.mxu0 0.0
    %1312 = vmatprep.subr.mxu0 0.0
    %1313 = vmatpush1.msra.mxu0 0.0
    %1314 = vmatprep.subr.mxu0 0.0
    %1315 = vmatpush1.msra.mxu0 0.0
    %1316 = vmatprep.subr.mxu0 0.0
    %1317 = vmatpush1.msra.mxu0 0.0
    %1318 = vmatprep.subr.mxu0 0.0
    %1319 = vmatpush1.msra.mxu0 0.0
    %1320 = vmatprep.subr.mxu0 0.0
    %1321 = vmatpush1.msra.mxu0 0.0
    %1322 = vmatprep.subr.mxu0 0.0
    %1323 = vmatpush1.msra.mxu0 0.0
    %1324 = vmatprep.subr.mxu0 0.0
    %1325 = vmatpush1.msra.mxu0 0.0
    %1326 = vmatprep.subr.mxu0 0.0
    %1327 = vmatpush1.msra.mxu0 0.0
    %1328 = vmatprep.subr.mxu0 0.0
    %1329 = vmatpush1.msra.mxu0 0.0
    %1330 = vmatprep.subr.mxu0 0.0
    %1331 = vmatpush1.msra.mxu0 0.0
    %1332 = vmatprep.subr.mxu0 0.0
    %1333 = vmatpush1.msra.mxu0 0.0
    %1334 = vmatprep.subr.mxu0 0.0
    %1335 = vmatpush1.msra.mxu0 0.0
    %1336 = vmatprep.subr.mxu0 0.0
    %1337 = vmatpush1.msra.mxu0 0.0
    %1338 = vmatprep.mubr.f32.mxu0 0.0
    %1339 = vmatmul.mubr.f32.gmra.mrb[0].mxu0 %v1194
    %v1340 = vpop.f32.mrb[0].mxu0
    %v1341 = vadd.f32 0.0, %v1340
    %v1342 = vpop.f32.mrb[0].mxu0
    %1343 = vmatprep.mubr.f32.mxu0 0.0
    %1344 = vmatmul.mubr.f32.gmra.mrb[0].mxu0 %v1197
    %v1345 = vpop.f32.mrb[0].mxu0
    %v1346 = vadd.f32 0.0, %v1345
    %v1347 = vpop.f32.mrb[0].mxu0
    %1348 = vdwg.mxu0
    %v1350 = vsel %vm73, %v69, 0
    %v1353 = vsel %vm73, %v70, 0
    %v1356 = vsel %vm73, %v71, 0
    %v1359 = vsel %vm73, %v72, 0
    %v1362 = vsel %vm80, %v1346, 0
    %1364 = vmatprep.subr.mxu0 0.0
    %1365 = vmatpush1.msra.mxu0 %v1341
    %1366 = vmatprep.subr.mxu0 0.0
    %1367 = vmatpush1.msra.mxu0 %v1362
    %1368 = vmatprep.subr.mxu0 0.0
    %1369 = vmatpush1.msra.mxu0 0.0
    %1370 = vmatprep.subr.mxu0 0.0
    %1371 = vmatpush1.msra.mxu0 0.0
    %1372 = vmatprep.subr.mxu0 0.0
    %1373 = vmatpush1.msra.mxu0 0.0
    %1374 = vmatprep.subr.mxu0 0.0
    %1375 = vmatpush1.msra.mxu0 0.0
    %1376 = vmatprep.subr.mxu0 0.0
    %1377 = vmatpush1.msra.mxu0 0.0
    %1378 = vmatprep.subr.mxu0 0.0
    %1379 = vmatpush1.msra.mxu0 0.0
    %1380 = vmatprep.subr.mxu0 0.0
    %1381 = vmatpush1.msra.mxu0 0.0
    %1382 = vmatprep.subr.mxu0 0.0
    %1383 = vmatpush1.msra.mxu0 0.0
    %1384 = vmatprep.subr.mxu0 0.0
    %1385 = vmatpush1.msra.mxu0 0.0
    %1386 = vmatprep.subr.mxu0 0.0
    %1387 = vmatpush1.msra.mxu0 0.0
    %1388 = vmatprep.subr.mxu0 0.0
    %1389 = vmatpush1.msra.mxu0 0.0
    %1390 = vmatprep.subr.mxu0 0.0
    %1391 = vmatpush1.msra.mxu0 0.0
    %1392 = vmatprep.subr.mxu0 0.0
    %1393 = vmatpush1.msra.mxu0 0.0
    %1394 = vmatprep.subr.mxu0 0.0
    %1395 = vmatpush1.msra.mxu0 0.0
    %1396 = vmatprep.subr.mxu0 0.0
    %1397 = vmatpush1.msra.mxu0 0.0
    %1398 = vmatprep.subr.mxu0 0.0
    %1399 = vmatpush1.msra.mxu0 0.0
    %1400 = vmatprep.subr.mxu0 0.0
    %1401 = vmatpush1.msra.mxu0 0.0
    %1402 = vmatprep.subr.mxu0 0.0
    %1403 = vmatpush1.msra.mxu0 0.0
    %1404 = vmatprep.subr.mxu0 0.0
    %1405 = vmatpush1.msra.mxu0 0.0
    %1406 = vmatprep.subr.mxu0 0.0
    %1407 = vmatpush1.msra.mxu0 0.0
    %1408 = vmatprep.subr.mxu0 0.0
    %1409 = vmatpush1.msra.mxu0 0.0
    %1410 = vmatprep.subr.mxu0 0.0
    %1411 = vmatpush1.msra.mxu0 0.0
    %1412 = vmatprep.subr.mxu0 0.0
    %1413 = vmatpush1.msra.mxu0 0.0
    %1414 = vmatprep.subr.mxu0 0.0
    %1415 = vmatpush1.msra.mxu0 0.0
    %1416 = vmatprep.subr.mxu0 0.0
    %1417 = vmatpush1.msra.mxu0 0.0
    %1418 = vmatprep.subr.mxu0 0.0
    %1419 = vmatpush1.msra.mxu0 0.0
    %1420 = vmatprep.subr.mxu0 0.0
    %1421 = vmatpush1.msra.mxu0 0.0
    %1422 = vmatprep.subr.mxu0 0.0
    %1423 = vmatpush1.msra.mxu0 0.0
    %1424 = vmatprep.subr.mxu0 0.0
    %1425 = vmatpush1.msra.mxu0 0.0
    %1426 = vmatprep.subr.mxu0 0.0
    %1427 = vmatpush1.msra.mxu0 0.0
    %1428 = vmatprep.mubr.f32.mxu0 0.0
    %1429 = vmatmul.mubr.f32.gmra.mrb[0].mxu0 %v1350
    %v1430 = vpop.f32.mrb[0].mxu0
    %v1431 = vadd.f32 0.0, %v1430
    %v1432 = vpop.f32.mrb[0].mxu0
    %1433 = vmatprep.mubr.f32.mxu0 0.0
    %1434 = vmatmul.mubr.f32.gmra.mrb[0].mxu0 %v1353
    %v1435 = vpop.f32.mrb[0].mxu0
    %v1436 = vadd.f32 0.0, %v1435
    %v1437 = vpop.f32.mrb[0].mxu0
    %1438 = vmatprep.mubr.f32.mxu0 0.0
    %1439 = vmatmul.mubr.f32.gmra.mrb[0].mxu0 %v1356
    %v1440 = vpop.f32.mrb[0].mxu0
    %v1441 = vadd.f32 0.0, %v1440
    %v1442 = vpop.f32.mrb[0].mxu0
    %1443 = vmatprep.mubr.f32.mxu0 0.0
    %1444 = vmatmul.mubr.f32.gmra.mrb[0].mxu0 %v1359
    %v1445 = vpop.f32.mrb[0].mxu0
    %v1446 = vadd.f32 0.0, %v1445
    %v1447 = vpop.f32.mrb[0].mxu0
    %1448 = vdwg.mxu0
    %v1450 = vsel %vm73, %v65, 0
    %v1453 = vsel %vm73, %v66, 0
    %v1456 = vsel %vm73, %v67, 0
    %v1459 = vsel %vm73, %v68, 0
    %v1462 = vsel %vm80, %v1271, 0
    %1464 = vmatprep.subr.mxu0 0.0
    %1465 = vmatpush1.msra.mxu0 %v1266
    %1466 = vmatprep.subr.mxu0 0.0
    %1467 = vmatpush1.msra.mxu0 %v1462
    %1468 = vmatprep.subr.mxu0 0.0
    %1469 = vmatpush1.msra.mxu0 0.0
    %1470 = vmatprep.subr.mxu0 0.0
    %1471 = vmatpush1.msra.mxu0 0.0
    %1472 = vmatprep.subr.mxu0 0.0
    %1473 = vmatpush1.msra.mxu0 0.0
    %1474 = vmatprep.subr.mxu0 0.0
    %1475 = vmatpush1.msra.mxu0 0.0
    %1476 = vmatprep.subr.mxu0 0.0
    %1477 = vmatpush1.msra.mxu0 0.0
    %1478 = vmatprep.subr.mxu0 0.0
    %1479 = vmatpush1.msra.mxu0 0.0
    %1480 = vmatprep.subr.mxu0 0.0
    %1481 = vmatpush1.msra.mxu0 0.0
    %1482 = vmatprep.subr.mxu0 0.0
    %1483 = vmatpush1.msra.mxu0 0.0
    %1484 = vmatprep.subr.mxu0 0.0
    %1485 = vmatpush1.msra.mxu0 0.0
    %1486 = vmatprep.subr.mxu0 0.0
    %1487 = vmatpush1.msra.mxu0 0.0
    %1488 = vmatprep.subr.mxu0 0.0
    %1489 = vmatpush1.msra.mxu0 0.0
    %1490 = vmatprep.subr.mxu0 0.0
    %1491 = vmatpush1.msra.mxu0 0.0
    %1492 = vmatprep.subr.mxu0 0.0
    %1493 = vmatpush1.msra.mxu0 0.0
    %1494 = vmatprep.subr.mxu0 0.0
    %1495 = vmatpush1.msra.mxu0 0.0
    %1496 = vmatprep.subr.mxu0 0.0
    %1497 = vmatpush1.msra.mxu0 0.0
    %1498 = vmatprep.subr.mxu0 0.0
    %1499 = vmatpush1.msra.mxu0 0.0
    %1500 = vmatprep.subr.mxu0 0.0
    %1501 = vmatpush1.msra.mxu0 0.0
    %1502 = vmatprep.subr.mxu0 0.0
    %1503 = vmatpush1.msra.mxu0 0.0
    %1504 = vmatprep.subr.mxu0 0.0
    %1505 = vmatpush1.msra.mxu0 0.0
    %1506 = vmatprep.subr.mxu0 0.0
    %1507 = vmatpush1.msra.mxu0 0.0
    %1508 = vmatprep.subr.mxu0 0.0
    %1509 = vmatpush1.msra.mxu0 0.0
    %1510 = vmatprep.subr.mxu0 0.0
    %1511 = vmatpush1.msra.mxu0 0.0
    %1512 = vmatprep.subr.mxu0 0.0
    %1513 = vmatpush1.msra.mxu0 0.0
    %1514 = vmatprep.subr.mxu0 0.0
    %1515 = vmatpush1.msra.mxu0 0.0
    %1516 = vmatprep.subr.mxu0 0.0
    %1517 = vmatpush1.msra.mxu0 0.0
    %1518 = vmatprep.subr.mxu0 0.0
    %1519 = vmatpush1.msra.mxu0 0.0
    %1520 = vmatprep.subr.mxu0 0.0
    %1521 = vmatpush1.msra.mxu0 0.0
    %1522 = vmatprep.subr.mxu0 0.0
    %1523 = vmatpush1.msra.mxu0 0.0
    %1524 = vmatprep.subr.mxu0 0.0
    %1525 = vmatpush1.msra.mxu0 0.0
    %1526 = vmatprep.subr.mxu0 0.0
    %1527 = vmatpush1.msra.mxu0 0.0
    %1528 = vmatprep.mubr.f32.mxu0 0.0
    %1529 = vmatmul.mubr.f32.gmra.mrb[0].mxu0 %v1450
    %v1530 = vpop.f32.mrb[0].mxu0
    %v1531 = vadd.f32 %v1431, %v1530
    %v1532 = vpop.f32.mrb[0].mxu0
    %1533 = vmatprep.mubr.f32.mxu0 0.0
    %1534 = vmatmul.mubr.f32.gmra.mrb[0].mxu0 %v1453
    %v1535 = vpop.f32.mrb[0].mxu0
    %v1536 = vadd.f32 %v1436, %v1535
    %v1537 = vpop.f32.mrb[0].mxu0
    %1538 = vmatprep.mubr.f32.mxu0 0.0
    %1539 = vmatmul.mubr.f32.gmra.mrb[0].mxu0 %v1456
    %v1540 = vpop.f32.mrb[0].mxu0
    %v1541 = vadd.f32 %v1441, %v1540
    %v1542 = vpop.f32.mrb[0].mxu0
    %1543 = vmatprep.mubr.f32.mxu0 0.0
    %1544 = vmatmul.mubr.f32.gmra.mrb[0].mxu0 %v1459
    %v1545 = vpop.f32.mrb[0].mxu0
    %v1546 = vadd.f32 %v1446, %v1545
    %v1547 = vpop.f32.mrb[0].mxu0
    %1548 = vdwg.mxu0
    %v1549 = vlaneseq
    %v1550 = vshrl.u32 %v1549, 7
    %v1551 = vsub.s32 0, %v1550
    %v1552 = vrot.slane %v61, %v1551
    %v1553 = vadd.f32 %v1531, %v1552
    %v1554 = vadd.f32 %v1536, %v1552
    %v1555 = vadd.f32 %v1541, %v1552
    %v1556 = vadd.f32 %v1546, %v1552
    %vm1557 = vcmask 130048
    %v1558 = vsel %vm1557, %v1553, 0.0
    %1559 = vadd.xlane.f32.xlu0 %v1558
    %v1560 = vpop.xlane.xlu0 %1559
    %v1561 = vsel %vm1557, %v1554, 0.0
    %1562 = vadd.xlane.f32.xlu0 %v1561
    %v1563 = vpop.xlane.xlu0 %1562
    %v1564 = vsel %vm1557, %v1555, 0.0
    %1565 = vadd.xlane.f32.xlu0 %v1564
    %v1566 = vpop.xlane.xlu0 %1565
    %vm1567 = vcmask 128000
    %v1568 = vsel %vm1567, %v1556, 0.0
    %1569 = vadd.xlane.f32.xlu0 %v1568
    %v1570 = vpop.xlane.xlu0 %1569
    %v1571 = vrcp.pop 16.0
    %v1572 = vmul.f32 %v1560, %v1571
    %v1573 = vmul.f32 %v1563, %v1571
    %v1574 = vmul.f32 %v1566, %v1571
    %v1575 = vmul.f32 %v1570, %v1571
    %v1576 = vsub.f32 %v1553, %v1572
    %v1577 = vsub.f32 %v1554, %v1573
    %v1578 = vsub.f32 %v1555, %v1574
    %v1579 = vsub.f32 %v1556, %v1575
    %v1580 = vmul.f32 %v1576, %v1576
    %v1581 = vmul.f32 %v1577, %v1577
    %v1582 = vmul.f32 %v1578, %v1578
    %v1583 = vmul.f32 %v1579, %v1579
    %v1584 = vsel %vm1557, %v1580, 0.0
    %1585 = vadd.xlane.f32.xlu0 %v1584
    %v1586 = vpop.xlane.xlu0 %1585
    %v1587 = vsel %vm1557, %v1581, 0.0
    %1588 = vadd.xlane.f32.xlu0 %v1587
    %v1589 = vpop.xlane.xlu0 %1588
    %v1590 = vsel %vm1557, %v1582, 0.0
    %1591 = vadd.xlane.f32.xlu0 %v1590
    %v1592 = vpop.xlane.xlu0 %1591
    %v1593 = vsel %vm1567, %v1583, 0.0
    %1594 = vadd.xlane.f32.xlu0 %v1593
    %v1595 = vpop.xlane.xlu0 %1594
    %v1596 = vmul.f32 %v1586, %v1571
    %v1597 = vmul.f32 %v1589, %v1571
    %v1598 = vmul.f32 %v1592, %v1571
    %v1599 = vmul.f32 %v1595, %v1571
    %v1600 = vadd.f32 %v1596, 1e-05
    %v1601 = vadd.f32 %v1597, 1e-05
    %v1602 = vadd.f32 %v1598, 1e-05
    %v1603 = vadd.f32 %v1599, 1e-05
    %v1604 = vrsqrt.pop %v1600
    %v1605 = vrsqrt.pop %v1601
    %v1606 = vrsqrt.pop %v1602
    %v1607 = vrsqrt.pop %v1603
    %v1608 = vmul.f32 %v1576, %v1604
    %v1609 = vmul.f32 %v1577, %v1605
    %v1610 = vmul.f32 %v1578, %v1606
    %v1611 = vmul.f32 %v1579, %v1607
    %v1612 = vlaneseq
    %v1613 = vshrl.u32 %v1612, 7
    %v1614 = vsub.s32 0, %v1613
    %v1615 = vrot.slane %v62, %v1614
    %v1616 = vmul.f32 %v1608, %v1615
    %v1617 = vmul.f32 %v1609, %v1615
    %v1618 = vmul.f32 %v1610, %v1615
    %v1619 = vmul.f32 %v1611, %v1615
    %v1620 = vlaneseq
    %v1621 = vshrl.u32 %v1620, 7
    %v1622 = vsub.s32 0, %v1621
    %v1623 = vrot.slane %v63, %v1622
    %v1624 = vadd.f32 %v1616, %v1623
    %v1625 = vadd.f32 %v1617, %v1623
    %v1626 = vadd.f32 %v1618, %v1623
    %v1627 = vadd.f32 %v1619, %v1623
    %v1628 = vmul.f32 %v1624, 0.5
    %v1629 = vmul.f32 %v1625, 0.5
    %v1630 = vmul.f32 %v1626, 0.5
    %v1631 = vmul.f32 %v1627, 0.5
    %v1632 = vmul.f32 %v1624, 0.044715
    %v1633 = vmul.f32 %v1625, 0.044715
    %v1634 = vmul.f32 %v1626, 0.044715
    %v1635 = vmul.f32 %v1627, 0.044715
    %v1636 = vmul.f32 %v1632, %v1624
    %v1637 = vmul.f32 %v1633, %v1625
    %v1638 = vmul.f32 %v1634, %v1626
    %v1639 = vmul.f32 %v1635, %v1627
    %v1640 = vmul.f32 %v1636, %v1624
    %v1641 = vmul.f32 %v1637, %v1625
    %v1642 = vmul.f32 %v1638, %v1626
    %v1643 = vmul.f32 %v1639, %v1627
    %v1644 = vadd.f32 %v1624, %v1640
    %v1645 = vadd.f32 %v1625, %v1641
    %v1646 = vadd.f32 %v1626, %v1642
    %v1647 = vadd.f32 %v1627, %v1643
    %v1648 = vmul.f32 %v1644, 0.7978846
    %v1649 = vmul.f32 %v1645, 0.7978846
    %v1650 = vmul.f32 %v1646, 0.7978846
    %v1651 = vmul.f32 %v1647, 0.7978846
    %v1652 = vtanh.pop %v1648
    %v1653 = vtanh.pop %v1649
    %v1654 = vtanh.pop %v1650
    %v1655 = vtanh.pop %v1651
    %v1656 = vadd.f32 %v1652, 1.0
    %v1657 = vadd.f32 %v1653, 1.0
    %v1658 = vadd.f32 %v1654, 1.0
    %v1659 = vadd.f32 %v1655, 1.0
    %v1660 = vmul.f32 %v1628, %v1656
    %v1661 = vmul.f32 %v1629, %v1657
    %v1662 = vmul.f32 %v1630, %v1658
    %v1663 = vmul.f32 %v1631, %v1659
    %1665 = vset.pattern.permute.xlu0 0
    %1666 = vperm.xlu0 %1665, %v64
    %v1667 = vpop.permute.xlu0 %1666
    %1669 = vxpose.xlu0.b32.start [1/16] %v48, 128
    %1670 = vxpose.xlu0.b32.cont [2/16] %v49, 128
    %1671 = vxpose.xlu0.b32.cont [3/16] 0.0, 128
    %1672 = vxpose.xlu0.b32.cont [4/16] 0.0, 128
    %1673 = vxpose.xlu0.b32.cont [5/16] 0.0, 128
    %1674 = vxpose.xlu0.b32.cont [6/16] 0.0, 128
    %1675 = vxpose.xlu0.b32.cont [7/16] 0.0, 128
    %1676 = vxpose.xlu0.b32.cont [8/16] 0.0, 128
    %1677 = vxpose.xlu0.b32.cont [9/16] 0.0, 128
    %1678 = vxpose.xlu0.b32.cont [10/16] 0.0, 128
    %1679 = vxpose.xlu0.b32.cont [11/16] 0.0, 128
    %1680 = vxpose.xlu0.b32.cont [12/16] 0.0, 128
    %1681 = vxpose.xlu0.b32.cont [13/16] 0.0, 128
    %1682 = vxpose.xlu0.b32.cont [14/16] 0.0, 128
    %1683 = vxpose.xlu0.b32.cont [15/16] 0.0, 128
    %1684 = vxpose.xlu0.b32.end [16/16] 0.0, 128
    %v1685 = vpop.trf.xlu0
    %v1686 = vpop.trf.xlu0
    %v1687 = vpop.trf.xlu0
    %v1688 = vpop.trf.xlu0
    %v1689 = vpop.trf.xlu0
    %v1690 = vpop.trf.xlu0
    %v1691 = vpop.trf.xlu0
    %v1692 = vpop.trf.xlu0
    %v1693 = vpop.trf.xlu0
    %v1694 = vpop.trf.xlu0
    %v1695 = vpop.trf.xlu0
    %v1696 = vpop.trf.xlu0
    %v1697 = vpop.trf.xlu0
    %v1698 = vpop.trf.xlu0
    %v1699 = vpop.trf.xlu0
    %v1700 = vpop.trf.xlu0
    %v1702 = vsel %vm1557, %v1685, 0
    %v1705 = vsel %vm1557, %v1660, 0
    %v1708 = vsel %vm1557, %v1661, 0
    %v1711 = vsel %vm1557, %v1662, 0
    %v1714 = vsel %vm1557, %v1663, 0
    %1716 = vmatprep.subr.mxu0 0.0
    %1717 = vmatpush1.xpose.msra.mxu0 %v1705
    %1718 = vmatprep.subr.mxu0 0.0
    %1719 = vmatpush1.xpose.msra.mxu0 %v1708
    %1720 = vmatprep.subr.mxu0 0.0
    %1721 = vmatpush1.xpose.msra.mxu0 %v1711
    %1722 = vmatprep.subr.mxu0 0.0
    %1723 = vmatpush1.xpose.msra.mxu0 %v1714
    %1724 = vmatprep.subr.mxu0 0.0
    %1725 = vmatpush1.xpose.msra.mxu0 0.0
    %1726 = vmatprep.subr.mxu0 0.0
    %1727 = vmatpush1.xpose.msra.mxu0 0.0
    %1728 = vmatprep.subr.mxu0 0.0
    %1729 = vmatpush1.xpose.msra.mxu0 0.0
    %1730 = vmatprep.subr.mxu0 0.0
    %1731 = vmatpush1.xpose.msra.mxu0 0.0
    %1732 = vmatprep.subr.mxu0 0.0
    %1733 = vmatpush1.xpose.msra.mxu0 0.0
    %1734 = vmatprep.subr.mxu0 0.0
    %1735 = vmatpush1.xpose.msra.mxu0 0.0
    %1736 = vmatprep.subr.mxu0 0.0
    %1737 = vmatpush1.xpose.msra.mxu0 0.0
    %1738 = vmatprep.subr.mxu0 0.0
    %1739 = vmatpush1.xpose.msra.mxu0 0.0
    %1740 = vmatprep.subr.mxu0 0.0
    %1741 = vmatpush1.xpose.msra.mxu0 0.0
    %1742 = vmatprep.subr.mxu0 0.0
    %1743 = vmatpush1.xpose.msra.mxu0 0.0
    %1744 = vmatprep.subr.mxu0 0.0
    %1745 = vmatpush1.xpose.msra.mxu0 0.0
    %1746 = vmatprep.subr.mxu0 0.0
    %1747 = vmatpush1.xpose.msra.mxu0 0.0
    %1748 = vmatprep.subr.mxu0 0.0
    %1749 = vmatpush1.xpose.msra.mxu0 0.0
    %1750 = vmatprep.subr.mxu0 0.0
    %1751 = vmatpush1.xpose.msra.mxu0 0.0
    %1752 = vmatprep.subr.mxu0 0.0
    %1753 = vmatpush1.xpose.msra.mxu0 0.0
    %1754 = vmatprep.subr.mxu0 0.0
    %1755 = vmatpush1.xpose.msra.mxu0 0.0
    %1756 = vmatprep.subr.mxu0 0.0
    %1757 = vmatpush1.xpose.msra.mxu0 0.0
    %1758 = vmatprep.subr.mxu0 0.0
    %1759 = vmatpush1.xpose.msra.mxu0 0.0
    %1760 = vmatprep.subr.mxu0 0.0
    %1761 = vmatpush1.xpose.msra.mxu0 0.0
    %1762 = vmatprep.subr.mxu0 0.0
    %1763 = vmatpush1.xpose.msra.mxu0 0.0
    %1764 = vmatprep.subr.mxu0 0.0
    %1765 = vmatpush1.xpose.msra.mxu0 0.0
    %1766 = vmatprep.subr.mxu0 0.0
    %1767 = vmatpush1.xpose.msra.mxu0 0.0
    %1768 = vmatprep.subr.mxu0 0.0
    %1769 = vmatpush1.xpose.msra.mxu0 0.0
    %1770 = vmatprep.subr.mxu0 0.0
    %1771 = vmatpush1.xpose.msra.mxu0 0.0
    %1772 = vmatprep.subr.mxu0 0.0
    %1773 = vmatpush1.xpose.msra.mxu0 0.0
    %1774 = vmatprep.subr.mxu0 0.0
    %1775 = vmatpush1.xpose.msra.mxu0 0.0
    %1776 = vmatprep.subr.mxu0 0.0
    %1777 = vmatpush1.xpose.msra.mxu0 0.0
    %1778 = vmatprep.subr.mxu0 0.0
    %1779 = vmatpush1.xpose.msra.mxu0 0.0
    %1780 = vmatprep.mubr.f32.mxu0 0.0
    %1781 = vmatmul.mubr.f32.gmra.mrb[0].mxu0 %v1702
    %v1782 = vpop.f32.mrb[0].mxu0
    %v1783 = vadd.f32 %v1667, %v1782
    %v1784 = vpop.f32.mrb[0].mxu0
    %1785 = vdwg.mxu0
    %vm1786 = vcmask 237568
    %1787 = vst.msk [vmem:[#allocation2] sm:$0x1] %vm1786, %v1783
    // Predicated region
    $region22: #{tpu_custom_call.1} parent=1 // pred_check
      _
    $region23: #{tpu_custom_call.1} parent=1 // pred_check_branch
      %1789 = sbr.rel (0) target = $region25
    $region24: #{tpu_custom_call.1} parent=1 // pred_region
      %s1791 = ssub.s32 16, 16
      %1792 = vsyncadd [#allocation3], %s1791
      %s1794 = sshll.u32 [#allocation2], 4
      %s1795 = int_to_ptr.vmem [resolvable:$true] %s1794
      %1797 = dma.vmem_to_hbm [thread:$0]  %s1795, 16, %s5, [#allocation3]
    $region25: #{tpu_custom_call.1} parent=1 // pred_fallthru
      _
    // Predicated region
    $region26: #{tpu_custom_call.1} parent=1 // pred_check
      _
    $region27: #{tpu_custom_call.1} parent=1 // pred_check_branch
      %1799 = sbr.rel (0) target = $region29
    $region28: #{tpu_custom_call.1} parent=1 // pred_region
      %1800 = dma.done [#allocation3], 16
    $region29: #{tpu_custom_call.1} parent=1 // pred_fallthru
      _
    %1801 = vsyncpa [#allocation3], 1

</llo_original>
